<compile_context>
chip_gen: v6e
topology: v6e:2x2x1
jax: 0.10.0
libtpu: 0.0.40
codegen_flags: <defaults>
</compile_context>

<pallas_src>
import functools

import jax
import jax.numpy as jnp
from jax.experimental import pallas as pl
from jax.experimental.pallas import tpu as pltpu


DEFAULT_CFG = dict(
    es=0, xs=0, ys=0, zs=0, ms=1, pts=1, dls=0,
    n_train_es=1, n_train_ms=0, n_train_pts=0,
    n_train_sum_dijs=2, n_train_min_dijs=2,
)


def _nout(cfg):
    total_trains = (cfg["n_train_es"] + cfg["n_train_ms"] + cfg["n_train_pts"]
                    + cfg["n_train_sum_dijs"] + cfg["n_train_min_dijs"])
    nout = (int(cfg["es"]) + int(cfg["xs"]) + int(cfg["ys"]) + int(cfg["zs"])
            + int(cfg["ms"]) + int(cfg["pts"]) + int(cfg["dls"]) + total_trains)
    return nout, total_trains


def _lola_kernel(x_ref, wt_ref, wflat_ref, wrsum_ref, o_ref, *, cfg):
    # Lane-dense layout: batch is the innermost (lane) axis.
    #   x_ref:     (F, P, Bt)    VMEM  features x particles x batch-tile
    #   wt_ref:    (T, P, P)     VMEM  transposed weights per head: wt[t] = w[t].T
    #   wflat_ref: (T*P*P,)      SMEM  raw weights (scalar reads for min_dij heads)
    #   wrsum_ref: (n_sum*P,)    SMEM  row-sums of the sum_dij head weights
    #   o_ref:     (NOUT, P, Bt) VMEM
    _, P, _ = x_ref.shape
    x = x_ref[...]
    E, X, Y, Z = x[0], x[1], x[2], x[3]                  # (P, Bt) each

    E2, X2, Y2, Z2 = E * E, X * X, Y * Y, Z * Z
    Ms = X2 + Y2 + Z2 - E2        # Minkowski metric (-1, 1, 1, 1, 0, ...) hard-coded
    Pts = jnp.sqrt(X2 + Y2)       # sqrt of non-negative sum (abs is redundant)

    row = [0]

    def put(val):                 # write each result row directly (no concat)
        o_ref[row[0], :, :] = val
        row[0] += 1

    if cfg["es"]:
        put(E)
    if cfg["xs"]:
        put(X)
    if cfg["ys"]:
        put(Y)
    if cfg["zs"]:
        put(Z)
    if cfg["ms"]:
        put(Ms)
    if cfg["pts"]:
        put(Pts)
    if cfg["dls"]:
        dE, dX = E - E[0:1], X - X[0:1]
        dY, dZ = Y - Y[0:1], Z - Z[0:1]
        put(dX * dX + dY * dY + dZ * dZ - dE * dE)

    wi = 0
    # Trainable E / M / Pt heads:  out[q, b] = sum_p w[p, q] * feat[p, b]
    # -> one (P,P)@(P,Bt) MXU matmul per head (N = Bt fills the lanes).
    for feat, n in ((E, cfg["n_train_es"]), (Ms, cfg["n_train_ms"]),
                    (Pts, cfg["n_train_pts"])):
        for _ in range(n):
            put(jnp.dot(wt_ref[wi], feat, preferred_element_type=jnp.float32))
            wi += 1

    n_sum = cfg["n_train_sum_dijs"]
    n_min = cfg["n_train_min_dijs"]
    if n_sum + n_min:
        # Pairwise Minkowski distances (explicit-difference form, matching the
        # torch magic1/magic2 computation numerically):
        #   m_rows[i][j, b] = sum_f metric[f] * (x[f, i, b] - x[f, j, b])**2
        m_rows = []
        for i in range(P):
            dE, dX = E - E[i:i + 1], X - X[i:i + 1]
            dY, dZ = Y - Y[i:i + 1], Z - Z[i:i + 1]
            m_rows.append(dX * dX + dY * dY + dZ * dZ - dE * dE)

        # sum_dij heads: out[j, b] = sum_i m_d2[i, j, b] * (sum_q w[wi][i, q])
        for h in range(n_sum):
            acc = wrsum_ref[h * P] * m_rows[0]
            for i in range(1, P):
                acc = acc + wrsum_ref[h * P + i] * m_rows[i]
            put(acc)
            wi += 1

        # min_dij heads: out[j, b] = min_q sum_i m_d2[i, j, b] * w[wi][i, q]
        # TODO(synk): for large P this scalar-weight loop should become an MXU
        # matmul; at P=8 the VPU path is cheaper and simpler.
        for _ in range(n_min):
            best = None
            for q in range(P):
                acc = wflat_ref[wi * P * P + q] * m_rows[0]
                for i in range(1, P):
                    acc = acc + wflat_ref[wi * P * P + i * P + q] * m_rows[i]
                best = acc if best is None else jnp.minimum(best, acc)
            put(best)
            wi += 1


def lola_forward(x, w, cfg=DEFAULT_CFG, batch_tile=128):
    """x: (B, F, P) float32, w: (T, P, P) float32 -> (B, NOUT, P) float32."""
    B, F, P = x.shape
    assert F >= 4, "Lola expects at least (E, px, py, pz) features"
    nout, total_trains = _nout(cfg)
    n_head1 = cfg["n_train_es"] + cfg["n_train_ms"] + cfg["n_train_pts"]
    n_sum = cfg["n_train_sum_dijs"]
    n_min = cfg["n_train_min_dijs"]

    Bt = int(batch_tile)
    n_tiles = pl.cdiv(B, Bt)
    Bpad = n_tiles * Bt

    # Lane-dense layout: batch on the lane (innermost) axis -> (F, P, Bpad).
    xt = jnp.transpose(x.astype(jnp.float32), (1, 2, 0))
    if Bpad != B:
        xt = jnp.pad(xt, ((0, 0), (0, 0), (0, Bpad - B)))

    if total_trains > 0:
        w32 = w.astype(jnp.float32)
    else:
        w32 = jnp.zeros((1, P, P), jnp.float32)          # dummy, never indexed
    wt = jnp.transpose(w32, (0, 2, 1))                   # (T, q, p) for MXU heads
    w_flat = w32.reshape(-1)                             # SMEM scalars (min heads)
    if n_sum > 0:
        wr = w32[n_head1:n_head1 + n_sum].sum(axis=2).reshape(-1)  # (n_sum*P,)
    else:
        wr = jnp.zeros((1,), jnp.float32)

    flops_per_elem = (8 * P + 11 * P * P
                      + 2 * P * P * n_head1
                      + 2 * P * P * n_sum
                      + 2 * P * P * P * n_min)
    cost = pl.CostEstimate(
        flops=int(Bpad) * int(flops_per_elem),
        transcendentals=int(Bpad) * int(P),
        bytes_accessed=4 * (Bpad * F * P + Bpad * nout * P + int(w_flat.size)))

    kernel = functools.partial(_lola_kernel, cfg=cfg)
    out_t = pl.pallas_call(
        kernel,
        out_shape=jax.ShapeDtypeStruct((nout, P, Bpad), jnp.float32),
        grid_spec=pltpu.PrefetchScalarGridSpec(
            num_scalar_prefetch=0,
            grid=(n_tiles,),
            in_specs=[
                pl.BlockSpec((F, P, Bt), lambda b: (0, 0, b)),
                pl.BlockSpec((wt.shape[0], P, P), lambda b: (0, 0, 0)),
                pl.BlockSpec(memory_space=pltpu.MemorySpace.SMEM),
                pl.BlockSpec(memory_space=pltpu.MemorySpace.SMEM),
            ],
            out_specs=pl.BlockSpec((nout, P, Bt), lambda b: (0, 0, b)),
        ),
        compiler_params=pltpu.CompilerParams(
            dimension_semantics=("parallel",)),
        cost_estimate=cost,
    )(xt, wt, w_flat, wr)

    # Back to the PyTorch (B, NOUT, P) convention, dropping batch padding.
    return jnp.transpose(out_t[:, :, :B], (2, 0, 1))


def lola_reference(x, w, cfg=DEFAULT_CFG):
    """Pure-JAX mirror of the PyTorch forward, for correctness checking."""
    B, F, P = x.shape
    metric = jnp.array([-1.0, 1.0, 1.0, 1.0] + [0.0] * max(F - 4, 0), jnp.float32)
    Es, Xs, Ys, Zs = x[:, 0, :], x[:, 1, :], x[:, 2, :], x[:, 3, :]
    x2 = x ** 2
    Ms = jnp.einsum('bfp,f->bp', x2, metric)
    Pts = jnp.abs(jnp.sqrt(x2[:, 1, :] + x2[:, 2, :]))

    feats = []
    if cfg["es"]: feats.append(Es)
    if cfg["xs"]: feats.append(Xs)
    if cfg["ys"]: feats.append(Ys)
    if cfg["zs"]: feats.append(Zs)
    if cfg["ms"]: feats.append(Ms)
    if cfg["pts"]: feats.append(Pts)
    if cfg["dls"]:
        dl = (x - x[:, :, 0:1]) ** 2
        feats.append(jnp.einsum('bfp,f->bp', dl, metric))

    wi = 0
    for _ in range(cfg["n_train_es"]):
        feats.append(jnp.einsum('bp,pq->bq', Es, w[wi])); wi += 1
    for _ in range(cfg["n_train_ms"]):
        feats.append(jnp.einsum('bp,pq->bq', Ms, w[wi])); wi += 1
    for _ in range(cfg["n_train_pts"]):
        feats.append(jnp.einsum('bp,pq->bq', Pts, w[wi])); wi += 1

    d2 = (x[:, :, :, None] - x[:, :, None, :]) ** 2            # (B, F, P, P)
    m_d2 = jnp.einsum('bfij,f->bij', d2, metric)               # (B, P, P)
    for _ in range(cfg["n_train_sum_dijs"]):
        t = jnp.einsum('bij,iq->bjq', m_d2, w[wi])
        feats.append(jnp.sum(t, axis=2)); wi += 1
    for _ in range(cfg["n_train_min_dijs"]):
        t = jnp.einsum('bij,iq->bjq', m_d2, w[wi])
        feats.append(jnp.min(t, axis=2)); wi += 1

    return jnp.stack(feats, axis=1)


if __name__ == "__main__":
    cfg = dict(DEFAULT_CFG)
    B, F, P = 256, 4, 8                     # (batch, features, particles)
    nout, total_trains = _nout(cfg)         # nout = 7, total_trains = 5

    key = jax.random.PRNGKey(0)
    kx, kw = jax.random.split(key)
    x = jax.random.normal(kx, (B, F, P), dtype=jnp.float32)
    # torch: uniform_(-0.05, 0.05) on (total_trains, P, P)
    w = jax.random.uniform(kw, (total_trains, P, P), dtype=jnp.float32,
                           minval=-0.05, maxval=0.05)

    out = lola_forward(x, w, cfg, batch_tile=128)   # grid = (2,): even, >= 2
    out = jax.block_until_ready(out)

    ref = lola_reference(x, w, cfg)
    assert out.shape == (B, nout, P), out.shape
    err = jnp.max(jnp.abs(out - ref))
    assert jnp.allclose(out, ref, rtol=1e-5, atol=1e-4), f"max abs err {err}"

    print("KERNEL_OK")
</pallas_src>

<mosaic_0001>
module attributes {stable_mosaic.version = 11 : i64} {
  func.func @_lola_kernel(%arg0: i32, %arg1: memref<4x8x128xf32, #tpu.memory_space<vmem>>, %arg2: memref<5x8x8xf32, #tpu.memory_space<vmem>>, %arg3: memref<320xf32, #tpu.memory_space<smem>>, %arg4: memref<16xf32, #tpu.memory_space<smem>>, %arg5: memref<7x8x128xf32, #tpu.memory_space<vmem>>) attributes {dimension_semantics = [#tpu.dimension_semantics<parallel>], iteration_bounds = array<i64: 2>, scalar_prefetch = 0 : i64, scratch_operands = 0 : i64, tpu.core_type = #tpu.core_type<tc>, window_params = [{transform_indices = @transform_0, window_bounds = array<i64: 4, 8, 128>}, {pipeline_mode = #tpu.pipeline_mode<synchronous>, transform_indices = @transform_1, window_bounds = array<i64: 5, 8, 8>}, {transform_indices = @transform_2, window_bounds = array<i64: 320>}, {transform_indices = @transform_3, window_bounds = array<i64: 16>}, {transform_indices = @transform_4, window_bounds = array<i64: 7, 8, 128>}]} {
    %c0 = arith.constant 0 : index
    %c0_0 = arith.constant 0 : index
    %c0_1 = arith.constant 0 : index
    %0 = vector.load %arg1[%c0, %c0_0, %c0_1] : memref<4x8x128xf32, #tpu.memory_space<vmem>>, vector<4x8x128xf32>
    %1 = vector.extract_strided_slice %0 {offsets = [0, 0, 0], sizes = [1, 8, 128], strides = [1, 1, 1]} : vector<4x8x128xf32> to vector<1x8x128xf32>
    %2 = vector.shape_cast %1 : vector<1x8x128xf32> to vector<8x128xf32>
    %3 = vector.extract_strided_slice %0 {offsets = [1, 0, 0], sizes = [1, 8, 128], strides = [1, 1, 1]} : vector<4x8x128xf32> to vector<1x8x128xf32>
    %4 = vector.shape_cast %3 : vector<1x8x128xf32> to vector<8x128xf32>
    %5 = vector.extract_strided_slice %0 {offsets = [2, 0, 0], sizes = [1, 8, 128], strides = [1, 1, 1]} : vector<4x8x128xf32> to vector<1x8x128xf32>
    %6 = vector.shape_cast %5 : vector<1x8x128xf32> to vector<8x128xf32>
    %7 = vector.extract_strided_slice %0 {offsets = [3, 0, 0], sizes = [1, 8, 128], strides = [1, 1, 1]} : vector<4x8x128xf32> to vector<1x8x128xf32>
    %8 = vector.shape_cast %7 : vector<1x8x128xf32> to vector<8x128xf32>
    %9 = arith.mulf %2, %2 : vector<8x128xf32>
    %10 = arith.mulf %4, %4 : vector<8x128xf32>
    %11 = arith.mulf %6, %6 : vector<8x128xf32>
    %12 = arith.mulf %8, %8 : vector<8x128xf32>
    %13 = arith.addf %10, %11 : vector<8x128xf32>
    %14 = arith.addf %13, %12 : vector<8x128xf32>
    %15 = arith.subf %14, %9 : vector<8x128xf32>
    %16 = arith.addf %10, %11 : vector<8x128xf32>
    %17 = math.sqrt %16 : vector<8x128xf32>
    %c0_2 = arith.constant 0 : index
    %c0_3 = arith.constant 0 : index
    %c0_4 = arith.constant 0 : index
    %18 = vector.load %arg5[%c0_2, %c0_3, %c0_4] : memref<7x8x128xf32, #tpu.memory_space<vmem>>, vector<1x8x128xf32>
    %19 = vector.shape_cast %18 : vector<1x8x128xf32> to vector<8x128xf32>
    %20 = vector.shape_cast %15 : vector<8x128xf32> to vector<1x8x128xf32>
    tpu.vector_store %arg5[%c0_2, %c0_3, %c0_4], %20 {strides = array<i32>} : memref<7x8x128xf32, #tpu.memory_space<vmem>>, vector<1x8x128xf32>,
    %c1 = arith.constant 1 : index
    %c0_5 = arith.constant 0 : index
    %c0_6 = arith.constant 0 : index
    %21 = vector.load %arg5[%c1, %c0_5, %c0_6] : memref<7x8x128xf32, #tpu.memory_space<vmem>>, vector<1x8x128xf32>
    %22 = vector.shape_cast %21 : vector<1x8x128xf32> to vector<8x128xf32>
    %23 = vector.shape_cast %17 : vector<8x128xf32> to vector<1x8x128xf32>
    tpu.vector_store %arg5[%c1, %c0_5, %c0_6], %23 {strides = array<i32>} : memref<7x8x128xf32, #tpu.memory_space<vmem>>, vector<1x8x128xf32>,
    %c0_7 = arith.constant 0 : index
    %c0_8 = arith.constant 0 : index
    %c0_9 = arith.constant 0 : index
    %24 = vector.load %arg2[%c0_7, %c0_8, %c0_9] : memref<5x8x8xf32, #tpu.memory_space<vmem>>, vector<1x8x8xf32>
    %25 = vector.shape_cast %24 : vector<1x8x8xf32> to vector<8x8xf32>
    %cst = arith.constant dense<0.000000e+00> : vector<8x128xf32>
    %26 = tpu.matmul %25, %2, %cst {dimension_numbers = #tpu.dot_dimension_numbers<[1], [0], [0], [1], [0, 0, 1, 1], [], []>} : vector<8x8xf32>, vector<8x128xf32>, vector<8x128xf32> -> vector<8x128xf32>
    %c2 = arith.constant 2 : index
    %c0_10 = arith.constant 0 : index
    %c0_11 = arith.constant 0 : index
    %27 = vector.load %arg5[%c2, %c0_10, %c0_11] : memref<7x8x128xf32, #tpu.memory_space<vmem>>, vector<1x8x128xf32>
    %28 = vector.shape_cast %27 : vector<1x8x128xf32> to vector<8x128xf32>
    %29 = vector.shape_cast %26 : vector<8x128xf32> to vector<1x8x128xf32>
    tpu.vector_store %arg5[%c2, %c0_10, %c0_11], %29 {strides = array<i32>} : memref<7x8x128xf32, #tpu.memory_space<vmem>>, vector<1x8x128xf32>,
    %30 = vector.extract_strided_slice %2 {offsets = [0, 0], sizes = [1, 128], strides = [1, 1]} : vector<8x128xf32> to vector<1x128xf32>
    %31 = vector.broadcast %30 : vector<1x128xf32> to vector<8x128xf32>
    %32 = arith.subf %2, %31 : vector<8x128xf32>
    %33 = vector.extract_strided_slice %4 {offsets = [0, 0], sizes = [1, 128], strides = [1, 1]} : vector<8x128xf32> to vector<1x128xf32>
    %34 = vector.broadcast %33 : vector<1x128xf32> to vector<8x128xf32>
    %35 = arith.subf %4, %34 : vector<8x128xf32>
    %36 = vector.extract_strided_slice %6 {offsets = [0, 0], sizes = [1, 128], strides = [1, 1]} : vector<8x128xf32> to vector<1x128xf32>
    %37 = vector.broadcast %36 : vector<1x128xf32> to vector<8x128xf32>
    %38 = arith.subf %6, %37 : vector<8x128xf32>
    %39 = vector.extract_strided_slice %8 {offsets = [0, 0], sizes = [1, 128], strides = [1, 1]} : vector<8x128xf32> to vector<1x128xf32>
    %40 = vector.broadcast %39 : vector<1x128xf32> to vector<8x128xf32>
    %41 = arith.subf %8, %40 : vector<8x128xf32>
    %42 = arith.mulf %35, %35 : vector<8x128xf32>
    %43 = arith.mulf %38, %38 : vector<8x128xf32>
    %44 = arith.addf %42, %43 : vector<8x128xf32>
    %45 = arith.mulf %41, %41 : vector<8x128xf32>
    %46 = arith.addf %44, %45 : vector<8x128xf32>
    %47 = arith.mulf %32, %32 : vector<8x128xf32>
    %48 = arith.subf %46, %47 : vector<8x128xf32>
    %49 = vector.extract_strided_slice %2 {offsets = [1, 0], sizes = [1, 128], strides = [1, 1]} : vector<8x128xf32> to vector<1x128xf32>
    %50 = vector.broadcast %49 : vector<1x128xf32> to vector<8x128xf32>
    %51 = arith.subf %2, %50 : vector<8x128xf32>
    %52 = vector.extract_strided_slice %4 {offsets = [1, 0], sizes = [1, 128], strides = [1, 1]} : vector<8x128xf32> to vector<1x128xf32>
    %53 = vector.broadcast %52 : vector<1x128xf32> to vector<8x128xf32>
    %54 = arith.subf %4, %53 : vector<8x128xf32>
    %55 = vector.extract_strided_slice %6 {offsets = [1, 0], sizes = [1, 128], strides = [1, 1]} : vector<8x128xf32> to vector<1x128xf32>
    %56 = vector.broadcast %55 : vector<1x128xf32> to vector<8x128xf32>
    %57 = arith.subf %6, %56 : vector<8x128xf32>
    %58 = vector.extract_strided_slice %8 {offsets = [1, 0], sizes = [1, 128], strides = [1, 1]} : vector<8x128xf32> to vector<1x128xf32>
    %59 = vector.broadcast %58 : vector<1x128xf32> to vector<8x128xf32>
    %60 = arith.subf %8, %59 : vector<8x128xf32>
    %61 = arith.mulf %54, %54 : vector<8x128xf32>
    %62 = arith.mulf %57, %57 : vector<8x128xf32>
    %63 = arith.addf %61, %62 : vector<8x128xf32>
    %64 = arith.mulf %60, %60 : vector<8x128xf32>
    %65 = arith.addf %63, %64 : vector<8x128xf32>
    %66 = arith.mulf %51, %51 : vector<8x128xf32>
    %67 = arith.subf %65, %66 : vector<8x128xf32>
    %68 = vector.extract_strided_slice %2 {offsets = [2, 0], sizes = [1, 128], strides = [1, 1]} : vector<8x128xf32> to vector<1x128xf32>
    %69 = vector.broadcast %68 : vector<1x128xf32> to vector<8x128xf32>
    %70 = arith.subf %2, %69 : vector<8x128xf32>
    %71 = vector.extract_strided_slice %4 {offsets = [2, 0], sizes = [1, 128], strides = [1, 1]} : vector<8x128xf32> to vector<1x128xf32>
    %72 = vector.broadcast %71 : vector<1x128xf32> to vector<8x128xf32>
    %73 = arith.subf %4, %72 : vector<8x128xf32>
    %74 = vector.extract_strided_slice %6 {offsets = [2, 0], sizes = [1, 128], strides = [1, 1]} : vector<8x128xf32> to vector<1x128xf32>
    %75 = vector.broadcast %74 : vector<1x128xf32> to vector<8x128xf32>
    %76 = arith.subf %6, %75 : vector<8x128xf32>
    %77 = vector.extract_strided_slice %8 {offsets = [2, 0], sizes = [1, 128], strides = [1, 1]} : vector<8x128xf32> to vector<1x128xf32>
    %78 = vector.broadcast %77 : vector<1x128xf32> to vector<8x128xf32>
    %79 = arith.subf %8, %78 : vector<8x128xf32>
    %80 = arith.mulf %73, %73 : vector<8x128xf32>
    %81 = arith.mulf %76, %76 : vector<8x128xf32>
    %82 = arith.addf %80, %81 : vector<8x128xf32>
    %83 = arith.mulf %79, %79 : vector<8x128xf32>
    %84 = arith.addf %82, %83 : vector<8x128xf32>
    %85 = arith.mulf %70, %70 : vector<8x128xf32>
    %86 = arith.subf %84, %85 : vector<8x128xf32>
    %87 = vector.extract_strided_slice %2 {offsets = [3, 0], sizes = [1, 128], strides = [1, 1]} : vector<8x128xf32> to vector<1x128xf32>
    %88 = vector.broadcast %87 : vector<1x128xf32> to vector<8x128xf32>
    %89 = arith.subf %2, %88 : vector<8x128xf32>
    %90 = vector.extract_strided_slice %4 {offsets = [3, 0], sizes = [1, 128], strides = [1, 1]} : vector<8x128xf32> to vector<1x128xf32>
    %91 = vector.broadcast %90 : vector<1x128xf32> to vector<8x128xf32>
    %92 = arith.subf %4, %91 : vector<8x128xf32>
    %93 = vector.extract_strided_slice %6 {offsets = [3, 0], sizes = [1, 128], strides = [1, 1]} : vector<8x128xf32> to vector<1x128xf32>
    %94 = vector.broadcast %93 : vector<1x128xf32> to vector<8x128xf32>
    %95 = arith.subf %6, %94 : vector<8x128xf32>
    %96 = vector.extract_strided_slice %8 {offsets = [3, 0], sizes = [1, 128], strides = [1, 1]} : vector<8x128xf32> to vector<1x128xf32>
    %97 = vector.broadcast %96 : vector<1x128xf32> to vector<8x128xf32>
    %98 = arith.subf %8, %97 : vector<8x128xf32>
    %99 = arith.mulf %92, %92 : vector<8x128xf32>
    %100 = arith.mulf %95, %95 : vector<8x128xf32>
    %101 = arith.addf %99, %100 : vector<8x128xf32>
    %102 = arith.mulf %98, %98 : vector<8x128xf32>
    %103 = arith.addf %101, %102 : vector<8x128xf32>
    %104 = arith.mulf %89, %89 : vector<8x128xf32>
    %105 = arith.subf %103, %104 : vector<8x128xf32>
    %106 = vector.extract_strided_slice %2 {offsets = [4, 0], sizes = [1, 128], strides = [1, 1]} : vector<8x128xf32> to vector<1x128xf32>
    %107 = vector.broadcast %106 : vector<1x128xf32> to vector<8x128xf32>
    %108 = arith.subf %2, %107 : vector<8x128xf32>
    %109 = vector.extract_strided_slice %4 {offsets = [4, 0], sizes = [1, 128], strides = [1, 1]} : vector<8x128xf32> to vector<1x128xf32>
    %110 = vector.broadcast %109 : vector<1x128xf32> to vector<8x128xf32>
    %111 = arith.subf %4, %110 : vector<8x128xf32>
    %112 = vector.extract_strided_slice %6 {offsets = [4, 0], sizes = [1, 128], strides = [1, 1]} : vector<8x128xf32> to vector<1x128xf32>
    %113 = vector.broadcast %112 : vector<1x128xf32> to vector<8x128xf32>
    %114 = arith.subf %6, %113 : vector<8x128xf32>
    %115 = vector.extract_strided_slice %8 {offsets = [4, 0], sizes = [1, 128], strides = [1, 1]} : vector<8x128xf32> to vector<1x128xf32>
    %116 = vector.broadcast %115 : vector<1x128xf32> to vector<8x128xf32>
    %117 = arith.subf %8, %116 : vector<8x128xf32>
    %118 = arith.mulf %111, %111 : vector<8x128xf32>
    %119 = arith.mulf %114, %114 : vector<8x128xf32>
    %120 = arith.addf %118, %119 : vector<8x128xf32>
    %121 = arith.mulf %117, %117 : vector<8x128xf32>
    %122 = arith.addf %120, %121 : vector<8x128xf32>
    %123 = arith.mulf %108, %108 : vector<8x128xf32>
    %124 = arith.subf %122, %123 : vector<8x128xf32>
    %125 = vector.extract_strided_slice %2 {offsets = [5, 0], sizes = [1, 128], strides = [1, 1]} : vector<8x128xf32> to vector<1x128xf32>
    %126 = vector.broadcast %125 : vector<1x128xf32> to vector<8x128xf32>
    %127 = arith.subf %2, %126 : vector<8x128xf32>
    %128 = vector.extract_strided_slice %4 {offsets = [5, 0], sizes = [1, 128], strides = [1, 1]} : vector<8x128xf32> to vector<1x128xf32>
    %129 = vector.broadcast %128 : vector<1x128xf32> to vector<8x128xf32>
    %130 = arith.subf %4, %129 : vector<8x128xf32>
    %131 = vector.extract_strided_slice %6 {offsets = [5, 0], sizes = [1, 128], strides = [1, 1]} : vector<8x128xf32> to vector<1x128xf32>
    %132 = vector.broadcast %131 : vector<1x128xf32> to vector<8x128xf32>
    %133 = arith.subf %6, %132 : vector<8x128xf32>
    %134 = vector.extract_strided_slice %8 {offsets = [5, 0], sizes = [1, 128], strides = [1, 1]} : vector<8x128xf32> to vector<1x128xf32>
    %135 = vector.broadcast %134 : vector<1x128xf32> to vector<8x128xf32>
    %136 = arith.subf %8, %135 : vector<8x128xf32>
    %137 = arith.mulf %130, %130 : vector<8x128xf32>
    %138 = arith.mulf %133, %133 : vector<8x128xf32>
    %139 = arith.addf %137, %138 : vector<8x128xf32>
    %140 = arith.mulf %136, %136 : vector<8x128xf32>
    %141 = arith.addf %139, %140 : vector<8x128xf32>
    %142 = arith.mulf %127, %127 : vector<8x128xf32>
    %143 = arith.subf %141, %142 : vector<8x128xf32>
    %144 = vector.extract_strided_slice %2 {offsets = [6, 0], sizes = [1, 128], strides = [1, 1]} : vector<8x128xf32> to vector<1x128xf32>
    %145 = vector.broadcast %144 : vector<1x128xf32> to vector<8x128xf32>
    %146 = arith.subf %2, %145 : vector<8x128xf32>
    %147 = vector.extract_strided_slice %4 {offsets = [6, 0], sizes = [1, 128], strides = [1, 1]} : vector<8x128xf32> to vector<1x128xf32>
    %148 = vector.broadcast %147 : vector<1x128xf32> to vector<8x128xf32>
    %149 = arith.subf %4, %148 : vector<8x128xf32>
    %150 = vector.extract_strided_slice %6 {offsets = [6, 0], sizes = [1, 128], strides = [1, 1]} : vector<8x128xf32> to vector<1x128xf32>
    %151 = vector.broadcast %150 : vector<1x128xf32> to vector<8x128xf32>
    %152 = arith.subf %6, %151 : vector<8x128xf32>
    %153 = vector.extract_strided_slice %8 {offsets = [6, 0], sizes = [1, 128], strides = [1, 1]} : vector<8x128xf32> to vector<1x128xf32>
    %154 = vector.broadcast %153 : vector<1x128xf32> to vector<8x128xf32>
    %155 = arith.subf %8, %154 : vector<8x128xf32>
    %156 = arith.mulf %149, %149 : vector<8x128xf32>
    %157 = arith.mulf %152, %152 : vector<8x128xf32>
    %158 = arith.addf %156, %157 : vector<8x128xf32>
    %159 = arith.mulf %155, %155 : vector<8x128xf32>
    %160 = arith.addf %158, %159 : vector<8x128xf32>
    %161 = arith.mulf %146, %146 : vector<8x128xf32>
    %162 = arith.subf %160, %161 : vector<8x128xf32>
    %163 = vector.extract_strided_slice %2 {offsets = [7, 0], sizes = [1, 128], strides = [1, 1]} : vector<8x128xf32> to vector<1x128xf32>
    %164 = vector.broadcast %163 : vector<1x128xf32> to vector<8x128xf32>
    %165 = arith.subf %2, %164 : vector<8x128xf32>
    %166 = vector.extract_strided_slice %4 {offsets = [7, 0], sizes = [1, 128], strides = [1, 1]} : vector<8x128xf32> to vector<1x128xf32>
    %167 = vector.broadcast %166 : vector<1x128xf32> to vector<8x128xf32>
    %168 = arith.subf %4, %167 : vector<8x128xf32>
    %169 = vector.extract_strided_slice %6 {offsets = [7, 0], sizes = [1, 128], strides = [1, 1]} : vector<8x128xf32> to vector<1x128xf32>
    %170 = vector.broadcast %169 : vector<1x128xf32> to vector<8x128xf32>
    %171 = arith.subf %6, %170 : vector<8x128xf32>
    %172 = vector.extract_strided_slice %8 {offsets = [7, 0], sizes = [1, 128], strides = [1, 1]} : vector<8x128xf32> to vector<1x128xf32>
    %173 = vector.broadcast %172 : vector<1x128xf32> to vector<8x128xf32>
    %174 = arith.subf %8, %173 : vector<8x128xf32>
    %175 = arith.mulf %168, %168 : vector<8x128xf32>
    %176 = arith.mulf %171, %171 : vector<8x128xf32>
    %177 = arith.addf %175, %176 : vector<8x128xf32>
    %178 = arith.mulf %174, %174 : vector<8x128xf32>
    %179 = arith.addf %177, %178 : vector<8x128xf32>
    %180 = arith.mulf %165, %165 : vector<8x128xf32>
    %181 = arith.subf %179, %180 : vector<8x128xf32>
    %c0_12 = arith.constant 0 : index
    %182 = memref.load %arg4[%c0_12] : memref<16xf32, #tpu.memory_space<smem>>
    %183 = vector.broadcast %182 : f32 to vector<8x128xf32>
    %184 = arith.mulf %183, %48 : vector<8x128xf32>
    %c1_13 = arith.constant 1 : index
    %185 = memref.load %arg4[%c1_13] : memref<16xf32, #tpu.memory_space<smem>>
    %186 = vector.broadcast %185 : f32 to vector<8x128xf32>
    %187 = arith.mulf %186, %67 : vector<8x128xf32>
    %188 = arith.addf %184, %187 : vector<8x128xf32>
    %c2_14 = arith.constant 2 : index
    %189 = memref.load %arg4[%c2_14] : memref<16xf32, #tpu.memory_space<smem>>
    %190 = vector.broadcast %189 : f32 to vector<8x128xf32>
    %191 = arith.mulf %190, %86 : vector<8x128xf32>
    %192 = arith.addf %188, %191 : vector<8x128xf32>
    %c3 = arith.constant 3 : index
    %193 = memref.load %arg4[%c3] : memref<16xf32, #tpu.memory_space<smem>>
    %194 = vector.broadcast %193 : f32 to vector<8x128xf32>
    %195 = arith.mulf %194, %105 : vector<8x128xf32>
    %196 = arith.addf %192, %195 : vector<8x128xf32>
    %c4 = arith.constant 4 : index
    %197 = memref.load %arg4[%c4] : memref<16xf32, #tpu.memory_space<smem>>
    %198 = vector.broadcast %197 : f32 to vector<8x128xf32>
    %199 = arith.mulf %198, %124 : vector<8x128xf32>
    %200 = arith.addf %196, %199 : vector<8x128xf32>
    %c5 = arith.constant 5 : index
    %201 = memref.load %arg4[%c5] : memref<16xf32, #tpu.memory_space<smem>>
    %202 = vector.broadcast %201 : f32 to vector<8x128xf32>
    %203 = arith.mulf %202, %143 : vector<8x128xf32>
    %204 = arith.addf %200, %203 : vector<8x128xf32>
    %c6 = arith.constant 6 : index
    %205 = memref.load %arg4[%c6] : memref<16xf32, #tpu.memory_space<smem>>
    %206 = vector.broadcast %205 : f32 to vector<8x128xf32>
    %207 = arith.mulf %206, %162 : vector<8x128xf32>
    %208 = arith.addf %204, %207 : vector<8x128xf32>
    %c7 = arith.constant 7 : index
    %209 = memref.load %arg4[%c7] : memref<16xf32, #tpu.memory_space<smem>>
    %210 = vector.broadcast %209 : f32 to vector<8x128xf32>
    %211 = arith.mulf %210, %181 : vector<8x128xf32>
    %212 = arith.addf %208, %211 : vector<8x128xf32>
    %c3_15 = arith.constant 3 : index
    %c0_16 = arith.constant 0 : index
    %c0_17 = arith.constant 0 : index
    %213 = vector.load %arg5[%c3_15, %c0_16, %c0_17] : memref<7x8x128xf32, #tpu.memory_space<vmem>>, vector<1x8x128xf32>
    %214 = vector.shape_cast %213 : vector<1x8x128xf32> to vector<8x128xf32>
    %215 = vector.shape_cast %212 : vector<8x128xf32> to vector<1x8x128xf32>
    tpu.vector_store %arg5[%c3_15, %c0_16, %c0_17], %215 {strides = array<i32>} : memref<7x8x128xf32, #tpu.memory_space<vmem>>, vector<1x8x128xf32>,
    %c8 = arith.constant 8 : index
    %216 = memref.load %arg4[%c8] : memref<16xf32, #tpu.memory_space<smem>>
    %217 = vector.broadcast %216 : f32 to vector<8x128xf32>
    %218 = arith.mulf %217, %48 : vector<8x128xf32>
    %c9 = arith.constant 9 : index
    %219 = memref.load %arg4[%c9] : memref<16xf32, #tpu.memory_space<smem>>
    %220 = vector.broadcast %219 : f32 to vector<8x128xf32>
    %221 = arith.mulf %220, %67 : vector<8x128xf32>
    %222 = arith.addf %218, %221 : vector<8x128xf32>
    %c10 = arith.constant 10 : index
    %223 = memref.load %arg4[%c10] : memref<16xf32, #tpu.memory_space<smem>>
    %224 = vector.broadcast %223 : f32 to vector<8x128xf32>
    %225 = arith.mulf %224, %86 : vector<8x128xf32>
    %226 = arith.addf %222, %225 : vector<8x128xf32>
    %c11 = arith.constant 11 : index
    %227 = memref.load %arg4[%c11] : memref<16xf32, #tpu.memory_space<smem>>
    %228 = vector.broadcast %227 : f32 to vector<8x128xf32>
    %229 = arith.mulf %228, %105 : vector<8x128xf32>
    %230 = arith.addf %226, %229 : vector<8x128xf32>
    %c12 = arith.constant 12 : index
    %231 = memref.load %arg4[%c12] : memref<16xf32, #tpu.memory_space<smem>>
    %232 = vector.broadcast %231 : f32 to vector<8x128xf32>
    %233 = arith.mulf %232, %124 : vector<8x128xf32>
    %234 = arith.addf %230, %233 : vector<8x128xf32>
    %c13 = arith.constant 13 : index
    %235 = memref.load %arg4[%c13] : memref<16xf32, #tpu.memory_space<smem>>
    %236 = vector.broadcast %235 : f32 to vector<8x128xf32>
    %237 = arith.mulf %236, %143 : vector<8x128xf32>
    %238 = arith.addf %234, %237 : vector<8x128xf32>
    %c14 = arith.constant 14 : index
    %239 = memref.load %arg4[%c14] : memref<16xf32, #tpu.memory_space<smem>>
    %240 = vector.broadcast %239 : f32 to vector<8x128xf32>
    %241 = arith.mulf %240, %162 : vector<8x128xf32>
    %242 = arith.addf %238, %241 : vector<8x128xf32>
    %c15 = arith.constant 15 : index
    %243 = memref.load %arg4[%c15] : memref<16xf32, #tpu.memory_space<smem>>
    %244 = vector.broadcast %243 : f32 to vector<8x128xf32>
    %245 = arith.mulf %244, %181 : vector<8x128xf32>
    %246 = arith.addf %242, %245 : vector<8x128xf32>
    %c4_18 = arith.constant 4 : index
    %c0_19 = arith.constant 0 : index
    %c0_20 = arith.constant 0 : index
    %247 = vector.load %arg5[%c4_18, %c0_19, %c0_20] : memref<7x8x128xf32, #tpu.memory_space<vmem>>, vector<1x8x128xf32>
    %248 = vector.shape_cast %247 : vector<1x8x128xf32> to vector<8x128xf32>
    %249 = vector.shape_cast %246 : vector<8x128xf32> to vector<1x8x128xf32>
    tpu.vector_store %arg5[%c4_18, %c0_19, %c0_20], %249 {strides = array<i32>} : memref<7x8x128xf32, #tpu.memory_space<vmem>>, vector<1x8x128xf32>,
    %c192 = arith.constant 192 : index
    %250 = memref.load %arg3[%c192] : memref<320xf32, #tpu.memory_space<smem>>
    %251 = vector.broadcast %250 : f32 to vector<8x128xf32>
    %252 = arith.mulf %251, %48 : vector<8x128xf32>
    %c200 = arith.constant 200 : index
    %253 = memref.load %arg3[%c200] : memref<320xf32, #tpu.memory_space<smem>>
    %254 = vector.broadcast %253 : f32 to vector<8x128xf32>
    %255 = arith.mulf %254, %67 : vector<8x128xf32>
    %256 = arith.addf %252, %255 : vector<8x128xf32>
    %c208 = arith.constant 208 : index
    %257 = memref.load %arg3[%c208] : memref<320xf32, #tpu.memory_space<smem>>
    %258 = vector.broadcast %257 : f32 to vector<8x128xf32>
    %259 = arith.mulf %258, %86 : vector<8x128xf32>
    %260 = arith.addf %256, %259 : vector<8x128xf32>
    %c216 = arith.constant 216 : index
    %261 = memref.load %arg3[%c216] : memref<320xf32, #tpu.memory_space<smem>>
    %262 = vector.broadcast %261 : f32 to vector<8x128xf32>
    %263 = arith.mulf %262, %105 : vector<8x128xf32>
    %264 = arith.addf %260, %263 : vector<8x128xf32>
    %c224 = arith.constant 224 : index
    %265 = memref.load %arg3[%c224] : memref<320xf32, #tpu.memory_space<smem>>
    %266 = vector.broadcast %265 : f32 to vector<8x128xf32>
    %267 = arith.mulf %266, %124 : vector<8x128xf32>
    %268 = arith.addf %264, %267 : vector<8x128xf32>
    %c232 = arith.constant 232 : index
    %269 = memref.load %arg3[%c232] : memref<320xf32, #tpu.memory_space<smem>>
    %270 = vector.broadcast %269 : f32 to vector<8x128xf32>
    %271 = arith.mulf %270, %143 : vector<8x128xf32>
    %272 = arith.addf %268, %271 : vector<8x128xf32>
    %c240 = arith.constant 240 : index
    %273 = memref.load %arg3[%c240] : memref<320xf32, #tpu.memory_space<smem>>
    %274 = vector.broadcast %273 : f32 to vector<8x128xf32>
    %275 = arith.mulf %274, %162 : vector<8x128xf32>
    %276 = arith.addf %272, %275 : vector<8x128xf32>
    %c248 = arith.constant 248 : index
    %277 = memref.load %arg3[%c248] : memref<320xf32, #tpu.memory_space<smem>>
    %278 = vector.broadcast %277 : f32 to vector<8x128xf32>
    %279 = arith.mulf %278, %181 : vector<8x128xf32>
    %280 = arith.addf %276, %279 : vector<8x128xf32>
    %c193 = arith.constant 193 : index
    %281 = memref.load %arg3[%c193] : memref<320xf32, #tpu.memory_space<smem>>
    %282 = vector.broadcast %281 : f32 to vector<8x128xf32>
    %283 = arith.mulf %282, %48 : vector<8x128xf32>
    %c201 = arith.constant 201 : index
    %284 = memref.load %arg3[%c201] : memref<320xf32, #tpu.memory_space<smem>>
    %285 = vector.broadcast %284 : f32 to vector<8x128xf32>
    %286 = arith.mulf %285, %67 : vector<8x128xf32>
    %287 = arith.addf %283, %286 : vector<8x128xf32>
    %c209 = arith.constant 209 : index
    %288 = memref.load %arg3[%c209] : memref<320xf32, #tpu.memory_space<smem>>
    %289 = vector.broadcast %288 : f32 to vector<8x128xf32>
    %290 = arith.mulf %289, %86 : vector<8x128xf32>
    %291 = arith.addf %287, %290 : vector<8x128xf32>
    %c217 = arith.constant 217 : index
    %292 = memref.load %arg3[%c217] : memref<320xf32, #tpu.memory_space<smem>>
    %293 = vector.broadcast %292 : f32 to vector<8x128xf32>
    %294 = arith.mulf %293, %105 : vector<8x128xf32>
    %295 = arith.addf %291, %294 : vector<8x128xf32>
    %c225 = arith.constant 225 : index
    %296 = memref.load %arg3[%c225] : memref<320xf32, #tpu.memory_space<smem>>
    %297 = vector.broadcast %296 : f32 to vector<8x128xf32>
    %298 = arith.mulf %297, %124 : vector<8x128xf32>
    %299 = arith.addf %295, %298 : vector<8x128xf32>
    %c233 = arith.constant 233 : index
    %300 = memref.load %arg3[%c233] : memref<320xf32, #tpu.memory_space<smem>>
    %301 = vector.broadcast %300 : f32 to vector<8x128xf32>
    %302 = arith.mulf %301, %143 : vector<8x128xf32>
    %303 = arith.addf %299, %302 : vector<8x128xf32>
    %c241 = arith.constant 241 : index
    %304 = memref.load %arg3[%c241] : memref<320xf32, #tpu.memory_space<smem>>
    %305 = vector.broadcast %304 : f32 to vector<8x128xf32>
    %306 = arith.mulf %305, %162 : vector<8x128xf32>
    %307 = arith.addf %303, %306 : vector<8x128xf32>
    %c249 = arith.constant 249 : index
    %308 = memref.load %arg3[%c249] : memref<320xf32, #tpu.memory_space<smem>>
    %309 = vector.broadcast %308 : f32 to vector<8x128xf32>
    %310 = arith.mulf %309, %181 : vector<8x128xf32>
    %311 = arith.addf %307, %310 : vector<8x128xf32>
    %312 = arith.minimumf %280, %311 : vector<8x128xf32>
    %c194 = arith.constant 194 : index
    %313 = memref.load %arg3[%c194] : memref<320xf32, #tpu.memory_space<smem>>
    %314 = vector.broadcast %313 : f32 to vector<8x128xf32>
    %315 = arith.mulf %314, %48 : vector<8x128xf32>
    %c202 = arith.constant 202 : index
    %316 = memref.load %arg3[%c202] : memref<320xf32, #tpu.memory_space<smem>>
    %317 = vector.broadcast %316 : f32 to vector<8x128xf32>
    %318 = arith.mulf %317, %67 : vector<8x128xf32>
    %319 = arith.addf %315, %318 : vector<8x128xf32>
    %c210 = arith.constant 210 : index
    %320 = memref.load %arg3[%c210] : memref<320xf32, #tpu.memory_space<smem>>
    %321 = vector.broadcast %320 : f32 to vector<8x128xf32>
    %322 = arith.mulf %321, %86 : vector<8x128xf32>
    %323 = arith.addf %319, %322 : vector<8x128xf32>
    %c218 = arith.constant 218 : index
    %324 = memref.load %arg3[%c218] : memref<320xf32, #tpu.memory_space<smem>>
    %325 = vector.broadcast %324 : f32 to vector<8x128xf32>
    %326 = arith.mulf %325, %105 : vector<8x128xf32>
    %327 = arith.addf %323, %326 : vector<8x128xf32>
    %c226 = arith.constant 226 : index
    %328 = memref.load %arg3[%c226] : memref<320xf32, #tpu.memory_space<smem>>
    %329 = vector.broadcast %328 : f32 to vector<8x128xf32>
    %330 = arith.mulf %329, %124 : vector<8x128xf32>
    %331 = arith.addf %327, %330 : vector<8x128xf32>
    %c234 = arith.constant 234 : index
    %332 = memref.load %arg3[%c234] : memref<320xf32, #tpu.memory_space<smem>>
    %333 = vector.broadcast %332 : f32 to vector<8x128xf32>
    %334 = arith.mulf %333, %143 : vector<8x128xf32>
    %335 = arith.addf %331, %334 : vector<8x128xf32>
    %c242 = arith.constant 242 : index
    %336 = memref.load %arg3[%c242] : memref<320xf32, #tpu.memory_space<smem>>
    %337 = vector.broadcast %336 : f32 to vector<8x128xf32>
    %338 = arith.mulf %337, %162 : vector<8x128xf32>
    %339 = arith.addf %335, %338 : vector<8x128xf32>
    %c250 = arith.constant 250 : index
    %340 = memref.load %arg3[%c250] : memref<320xf32, #tpu.memory_space<smem>>
    %341 = vector.broadcast %340 : f32 to vector<8x128xf32>
    %342 = arith.mulf %341, %181 : vector<8x128xf32>
    %343 = arith.addf %339, %342 : vector<8x128xf32>
    %344 = arith.minimumf %312, %343 : vector<8x128xf32>
    %c195 = arith.constant 195 : index
    %345 = memref.load %arg3[%c195] : memref<320xf32, #tpu.memory_space<smem>>
    %346 = vector.broadcast %345 : f32 to vector<8x128xf32>
    %347 = arith.mulf %346, %48 : vector<8x128xf32>
    %c203 = arith.constant 203 : index
    %348 = memref.load %arg3[%c203] : memref<320xf32, #tpu.memory_space<smem>>
    %349 = vector.broadcast %348 : f32 to vector<8x128xf32>
    %350 = arith.mulf %349, %67 : vector<8x128xf32>
    %351 = arith.addf %347, %350 : vector<8x128xf32>
    %c211 = arith.constant 211 : index
    %352 = memref.load %arg3[%c211] : memref<320xf32, #tpu.memory_space<smem>>
    %353 = vector.broadcast %352 : f32 to vector<8x128xf32>
    %354 = arith.mulf %353, %86 : vector<8x128xf32>
    %355 = arith.addf %351, %354 : vector<8x128xf32>
    %c219 = arith.constant 219 : index
    %356 = memref.load %arg3[%c219] : memref<320xf32, #tpu.memory_space<smem>>
    %357 = vector.broadcast %356 : f32 to vector<8x128xf32>
    %358 = arith.mulf %357, %105 : vector<8x128xf32>
    %359 = arith.addf %355, %358 : vector<8x128xf32>
    %c227 = arith.constant 227 : index
    %360 = memref.load %arg3[%c227] : memref<320xf32, #tpu.memory_space<smem>>
    %361 = vector.broadcast %360 : f32 to vector<8x128xf32>
    %362 = arith.mulf %361, %124 : vector<8x128xf32>
    %363 = arith.addf %359, %362 : vector<8x128xf32>
    %c235 = arith.constant 235 : index
    %364 = memref.load %arg3[%c235] : memref<320xf32, #tpu.memory_space<smem>>
    %365 = vector.broadcast %364 : f32 to vector<8x128xf32>
    %366 = arith.mulf %365, %143 : vector<8x128xf32>
    %367 = arith.addf %363, %366 : vector<8x128xf32>
    %c243 = arith.constant 243 : index
    %368 = memref.load %arg3[%c243] : memref<320xf32, #tpu.memory_space<smem>>
    %369 = vector.broadcast %368 : f32 to vector<8x128xf32>
    %370 = arith.mulf %369, %162 : vector<8x128xf32>
    %371 = arith.addf %367, %370 : vector<8x128xf32>
    %c251 = arith.constant 251 : index
    %372 = memref.load %arg3[%c251] : memref<320xf32, #tpu.memory_space<smem>>
    %373 = vector.broadcast %372 : f32 to vector<8x128xf32>
    %374 = arith.mulf %373, %181 : vector<8x128xf32>
    %375 = arith.addf %371, %374 : vector<8x128xf32>
    %376 = arith.minimumf %344, %375 : vector<8x128xf32>
    %c196 = arith.constant 196 : index
    %377 = memref.load %arg3[%c196] : memref<320xf32, #tpu.memory_space<smem>>
    %378 = vector.broadcast %377 : f32 to vector<8x128xf32>
    %379 = arith.mulf %378, %48 : vector<8x128xf32>
    %c204 = arith.constant 204 : index
    %380 = memref.load %arg3[%c204] : memref<320xf32, #tpu.memory_space<smem>>
    %381 = vector.broadcast %380 : f32 to vector<8x128xf32>
    %382 = arith.mulf %381, %67 : vector<8x128xf32>
    %383 = arith.addf %379, %382 : vector<8x128xf32>
    %c212 = arith.constant 212 : index
    %384 = memref.load %arg3[%c212] : memref<320xf32, #tpu.memory_space<smem>>
    %385 = vector.broadcast %384 : f32 to vector<8x128xf32>
    %386 = arith.mulf %385, %86 : vector<8x128xf32>
    %387 = arith.addf %383, %386 : vector<8x128xf32>
    %c220 = arith.constant 220 : index
    %388 = memref.load %arg3[%c220] : memref<320xf32, #tpu.memory_space<smem>>
    %389 = vector.broadcast %388 : f32 to vector<8x128xf32>
    %390 = arith.mulf %389, %105 : vector<8x128xf32>
    %391 = arith.addf %387, %390 : vector<8x128xf32>
    %c228 = arith.constant 228 : index
    %392 = memref.load %arg3[%c228] : memref<320xf32, #tpu.memory_space<smem>>
    %393 = vector.broadcast %392 : f32 to vector<8x128xf32>
    %394 = arith.mulf %393, %124 : vector<8x128xf32>
    %395 = arith.addf %391, %394 : vector<8x128xf32>
    %c236 = arith.constant 236 : index
    %396 = memref.load %arg3[%c236] : memref<320xf32, #tpu.memory_space<smem>>
    %397 = vector.broadcast %396 : f32 to vector<8x128xf32>
    %398 = arith.mulf %397, %143 : vector<8x128xf32>
    %399 = arith.addf %395, %398 : vector<8x128xf32>
    %c244 = arith.constant 244 : index
    %400 = memref.load %arg3[%c244] : memref<320xf32, #tpu.memory_space<smem>>
    %401 = vector.broadcast %400 : f32 to vector<8x128xf32>
    %402 = arith.mulf %401, %162 : vector<8x128xf32>
    %403 = arith.addf %399, %402 : vector<8x128xf32>
    %c252 = arith.constant 252 : index
    %404 = memref.load %arg3[%c252] : memref<320xf32, #tpu.memory_space<smem>>
    %405 = vector.broadcast %404 : f32 to vector<8x128xf32>
    %406 = arith.mulf %405, %181 : vector<8x128xf32>
    %407 = arith.addf %403, %406 : vector<8x128xf32>
    %408 = arith.minimumf %376, %407 : vector<8x128xf32>
    %c197 = arith.constant 197 : index
    %409 = memref.load %arg3[%c197] : memref<320xf32, #tpu.memory_space<smem>>
    %410 = vector.broadcast %409 : f32 to vector<8x128xf32>
    %411 = arith.mulf %410, %48 : vector<8x128xf32>
    %c205 = arith.constant 205 : index
    %412 = memref.load %arg3[%c205] : memref<320xf32, #tpu.memory_space<smem>>
    %413 = vector.broadcast %412 : f32 to vector<8x128xf32>
    %414 = arith.mulf %413, %67 : vector<8x128xf32>
    %415 = arith.addf %411, %414 : vector<8x128xf32>
    %c213 = arith.constant 213 : index
    %416 = memref.load %arg3[%c213] : memref<320xf32, #tpu.memory_space<smem>>
    %417 = vector.broadcast %416 : f32 to vector<8x128xf32>
    %418 = arith.mulf %417, %86 : vector<8x128xf32>
    %419 = arith.addf %415, %418 : vector<8x128xf32>
    %c221 = arith.constant 221 : index
    %420 = memref.load %arg3[%c221] : memref<320xf32, #tpu.memory_space<smem>>
    %421 = vector.broadcast %420 : f32 to vector<8x128xf32>
    %422 = arith.mulf %421, %105 : vector<8x128xf32>
    %423 = arith.addf %419, %422 : vector<8x128xf32>
    %c229 = arith.constant 229 : index
    %424 = memref.load %arg3[%c229] : memref<320xf32, #tpu.memory_space<smem>>
    %425 = vector.broadcast %424 : f32 to vector<8x128xf32>
    %426 = arith.mulf %425, %124 : vector<8x128xf32>
    %427 = arith.addf %423, %426 : vector<8x128xf32>
    %c237 = arith.constant 237 : index
    %428 = memref.load %arg3[%c237] : memref<320xf32, #tpu.memory_space<smem>>
    %429 = vector.broadcast %428 : f32 to vector<8x128xf32>
    %430 = arith.mulf %429, %143 : vector<8x128xf32>
    %431 = arith.addf %427, %430 : vector<8x128xf32>
    %c245 = arith.constant 245 : index
    %432 = memref.load %arg3[%c245] : memref<320xf32, #tpu.memory_space<smem>>
    %433 = vector.broadcast %432 : f32 to vector<8x128xf32>
    %434 = arith.mulf %433, %162 : vector<8x128xf32>
    %435 = arith.addf %431, %434 : vector<8x128xf32>
    %c253 = arith.constant 253 : index
    %436 = memref.load %arg3[%c253] : memref<320xf32, #tpu.memory_space<smem>>
    %437 = vector.broadcast %436 : f32 to vector<8x128xf32>
    %438 = arith.mulf %437, %181 : vector<8x128xf32>
    %439 = arith.addf %435, %438 : vector<8x128xf32>
    %440 = arith.minimumf %408, %439 : vector<8x128xf32>
    %c198 = arith.constant 198 : index
    %441 = memref.load %arg3[%c198] : memref<320xf32, #tpu.memory_space<smem>>
    %442 = vector.broadcast %441 : f32 to vector<8x128xf32>
    %443 = arith.mulf %442, %48 : vector<8x128xf32>
    %c206 = arith.constant 206 : index
    %444 = memref.load %arg3[%c206] : memref<320xf32, #tpu.memory_space<smem>>
    %445 = vector.broadcast %444 : f32 to vector<8x128xf32>
    %446 = arith.mulf %445, %67 : vector<8x128xf32>
    %447 = arith.addf %443, %446 : vector<8x128xf32>
    %c214 = arith.constant 214 : index
    %448 = memref.load %arg3[%c214] : memref<320xf32, #tpu.memory_space<smem>>
    %449 = vector.broadcast %448 : f32 to vector<8x128xf32>
    %450 = arith.mulf %449, %86 : vector<8x128xf32>
    %451 = arith.addf %447, %450 : vector<8x128xf32>
    %c222 = arith.constant 222 : index
    %452 = memref.load %arg3[%c222] : memref<320xf32, #tpu.memory_space<smem>>
    %453 = vector.broadcast %452 : f32 to vector<8x128xf32>
    %454 = arith.mulf %453, %105 : vector<8x128xf32>
    %455 = arith.addf %451, %454 : vector<8x128xf32>
    %c230 = arith.constant 230 : index
    %456 = memref.load %arg3[%c230] : memref<320xf32, #tpu.memory_space<smem>>
    %457 = vector.broadcast %456 : f32 to vector<8x128xf32>
    %458 = arith.mulf %457, %124 : vector<8x128xf32>
    %459 = arith.addf %455, %458 : vector<8x128xf32>
    %c238 = arith.constant 238 : index
    %460 = memref.load %arg3[%c238] : memref<320xf32, #tpu.memory_space<smem>>
    %461 = vector.broadcast %460 : f32 to vector<8x128xf32>
    %462 = arith.mulf %461, %143 : vector<8x128xf32>
    %463 = arith.addf %459, %462 : vector<8x128xf32>
    %c246 = arith.constant 246 : index
    %464 = memref.load %arg3[%c246] : memref<320xf32, #tpu.memory_space<smem>>
    %465 = vector.broadcast %464 : f32 to vector<8x128xf32>
    %466 = arith.mulf %465, %162 : vector<8x128xf32>
    %467 = arith.addf %463, %466 : vector<8x128xf32>
    %c254 = arith.constant 254 : index
    %468 = memref.load %arg3[%c254] : memref<320xf32, #tpu.memory_space<smem>>
    %469 = vector.broadcast %468 : f32 to vector<8x128xf32>
    %470 = arith.mulf %469, %181 : vector<8x128xf32>
    %471 = arith.addf %467, %470 : vector<8x128xf32>
    %472 = arith.minimumf %440, %471 : vector<8x128xf32>
    %c199 = arith.constant 199 : index
    %473 = memref.load %arg3[%c199] : memref<320xf32, #tpu.memory_space<smem>>
    %474 = vector.broadcast %473 : f32 to vector<8x128xf32>
    %475 = arith.mulf %474, %48 : vector<8x128xf32>
    %c207 = arith.constant 207 : index
    %476 = memref.load %arg3[%c207] : memref<320xf32, #tpu.memory_space<smem>>
    %477 = vector.broadcast %476 : f32 to vector<8x128xf32>
    %478 = arith.mulf %477, %67 : vector<8x128xf32>
    %479 = arith.addf %475, %478 : vector<8x128xf32>
    %c215 = arith.constant 215 : index
    %480 = memref.load %arg3[%c215] : memref<320xf32, #tpu.memory_space<smem>>
    %481 = vector.broadcast %480 : f32 to vector<8x128xf32>
    %482 = arith.mulf %481, %86 : vector<8x128xf32>
    %483 = arith.addf %479, %482 : vector<8x128xf32>
    %c223 = arith.constant 223 : index
    %484 = memref.load %arg3[%c223] : memref<320xf32, #tpu.memory_space<smem>>
    %485 = vector.broadcast %484 : f32 to vector<8x128xf32>
    %486 = arith.mulf %485, %105 : vector<8x128xf32>
    %487 = arith.addf %483, %486 : vector<8x128xf32>
    %c231 = arith.constant 231 : index
    %488 = memref.load %arg3[%c231] : memref<320xf32, #tpu.memory_space<smem>>
    %489 = vector.broadcast %488 : f32 to vector<8x128xf32>
    %490 = arith.mulf %489, %124 : vector<8x128xf32>
    %491 = arith.addf %487, %490 : vector<8x128xf32>
    %c239 = arith.constant 239 : index
    %492 = memref.load %arg3[%c239] : memref<320xf32, #tpu.memory_space<smem>>
    %493 = vector.broadcast %492 : f32 to vector<8x128xf32>
    %494 = arith.mulf %493, %143 : vector<8x128xf32>
    %495 = arith.addf %491, %494 : vector<8x128xf32>
    %c247 = arith.constant 247 : index
    %496 = memref.load %arg3[%c247] : memref<320xf32, #tpu.memory_space<smem>>
    %497 = vector.broadcast %496 : f32 to vector<8x128xf32>
    %498 = arith.mulf %497, %162 : vector<8x128xf32>
    %499 = arith.addf %495, %498 : vector<8x128xf32>
    %c255 = arith.constant 255 : index
    %500 = memref.load %arg3[%c255] : memref<320xf32, #tpu.memory_space<smem>>
    %501 = vector.broadcast %500 : f32 to vector<8x128xf32>
    %502 = arith.mulf %501, %181 : vector<8x128xf32>
    %503 = arith.addf %499, %502 : vector<8x128xf32>
    %504 = arith.minimumf %472, %503 : vector<8x128xf32>
    %c5_21 = arith.constant 5 : index
    %c0_22 = arith.constant 0 : index
    %c0_23 = arith.constant 0 : index
    %505 = vector.load %arg5[%c5_21, %c0_22, %c0_23] : memref<7x8x128xf32, #tpu.memory_space<vmem>>, vector<1x8x128xf32>
    %506 = vector.shape_cast %505 : vector<1x8x128xf32> to vector<8x128xf32>
    %507 = vector.shape_cast %504 : vector<8x128xf32> to vector<1x8x128xf32>
    tpu.vector_store %arg5[%c5_21, %c0_22, %c0_23], %507 {strides = array<i32>} : memref<7x8x128xf32, #tpu.memory_space<vmem>>, vector<1x8x128xf32>,
    %c256 = arith.constant 256 : index
    %508 = memref.load %arg3[%c256] : memref<320xf32, #tpu.memory_space<smem>>
    %509 = vector.broadcast %508 : f32 to vector<8x128xf32>
    %510 = arith.mulf %509, %48 : vector<8x128xf32>
    %c264 = arith.constant 264 : index
    %511 = memref.load %arg3[%c264] : memref<320xf32, #tpu.memory_space<smem>>
    %512 = vector.broadcast %511 : f32 to vector<8x128xf32>
    %513 = arith.mulf %512, %67 : vector<8x128xf32>
    %514 = arith.addf %510, %513 : vector<8x128xf32>
    %c272 = arith.constant 272 : index
    %515 = memref.load %arg3[%c272] : memref<320xf32, #tpu.memory_space<smem>>
    %516 = vector.broadcast %515 : f32 to vector<8x128xf32>
    %517 = arith.mulf %516, %86 : vector<8x128xf32>
    %518 = arith.addf %514, %517 : vector<8x128xf32>
    %c280 = arith.constant 280 : index
    %519 = memref.load %arg3[%c280] : memref<320xf32, #tpu.memory_space<smem>>
    %520 = vector.broadcast %519 : f32 to vector<8x128xf32>
    %521 = arith.mulf %520, %105 : vector<8x128xf32>
    %522 = arith.addf %518, %521 : vector<8x128xf32>
    %c288 = arith.constant 288 : index
    %523 = memref.load %arg3[%c288] : memref<320xf32, #tpu.memory_space<smem>>
    %524 = vector.broadcast %523 : f32 to vector<8x128xf32>
    %525 = arith.mulf %524, %124 : vector<8x128xf32>
    %526 = arith.addf %522, %525 : vector<8x128xf32>
    %c296 = arith.constant 296 : index
    %527 = memref.load %arg3[%c296] : memref<320xf32, #tpu.memory_space<smem>>
    %528 = vector.broadcast %527 : f32 to vector<8x128xf32>
    %529 = arith.mulf %528, %143 : vector<8x128xf32>
    %530 = arith.addf %526, %529 : vector<8x128xf32>
    %c304 = arith.constant 304 : index
    %531 = memref.load %arg3[%c304] : memref<320xf32, #tpu.memory_space<smem>>
    %532 = vector.broadcast %531 : f32 to vector<8x128xf32>
    %533 = arith.mulf %532, %162 : vector<8x128xf32>
    %534 = arith.addf %530, %533 : vector<8x128xf32>
    %c312 = arith.constant 312 : index
    %535 = memref.load %arg3[%c312] : memref<320xf32, #tpu.memory_space<smem>>
    %536 = vector.broadcast %535 : f32 to vector<8x128xf32>
    %537 = arith.mulf %536, %181 : vector<8x128xf32>
    %538 = arith.addf %534, %537 : vector<8x128xf32>
    %c257 = arith.constant 257 : index
    %539 = memref.load %arg3[%c257] : memref<320xf32, #tpu.memory_space<smem>>
    %540 = vector.broadcast %539 : f32 to vector<8x128xf32>
    %541 = arith.mulf %540, %48 : vector<8x128xf32>
    %c265 = arith.constant 265 : index
    %542 = memref.load %arg3[%c265] : memref<320xf32, #tpu.memory_space<smem>>
    %543 = vector.broadcast %542 : f32 to vector<8x128xf32>
    %544 = arith.mulf %543, %67 : vector<8x128xf32>
    %545 = arith.addf %541, %544 : vector<8x128xf32>
    %c273 = arith.constant 273 : index
    %546 = memref.load %arg3[%c273] : memref<320xf32, #tpu.memory_space<smem>>
    %547 = vector.broadcast %546 : f32 to vector<8x128xf32>
    %548 = arith.mulf %547, %86 : vector<8x128xf32>
    %549 = arith.addf %545, %548 : vector<8x128xf32>
    %c281 = arith.constant 281 : index
    %550 = memref.load %arg3[%c281] : memref<320xf32, #tpu.memory_space<smem>>
    %551 = vector.broadcast %550 : f32 to vector<8x128xf32>
    %552 = arith.mulf %551, %105 : vector<8x128xf32>
    %553 = arith.addf %549, %552 : vector<8x128xf32>
    %c289 = arith.constant 289 : index
    %554 = memref.load %arg3[%c289] : memref<320xf32, #tpu.memory_space<smem>>
    %555 = vector.broadcast %554 : f32 to vector<8x128xf32>
    %556 = arith.mulf %555, %124 : vector<8x128xf32>
    %557 = arith.addf %553, %556 : vector<8x128xf32>
    %c297 = arith.constant 297 : index
    %558 = memref.load %arg3[%c297] : memref<320xf32, #tpu.memory_space<smem>>
    %559 = vector.broadcast %558 : f32 to vector<8x128xf32>
    %560 = arith.mulf %559, %143 : vector<8x128xf32>
    %561 = arith.addf %557, %560 : vector<8x128xf32>
    %c305 = arith.constant 305 : index
    %562 = memref.load %arg3[%c305] : memref<320xf32, #tpu.memory_space<smem>>
    %563 = vector.broadcast %562 : f32 to vector<8x128xf32>
    %564 = arith.mulf %563, %162 : vector<8x128xf32>
    %565 = arith.addf %561, %564 : vector<8x128xf32>
    %c313 = arith.constant 313 : index
    %566 = memref.load %arg3[%c313] : memref<320xf32, #tpu.memory_space<smem>>
    %567 = vector.broadcast %566 : f32 to vector<8x128xf32>
    %568 = arith.mulf %567, %181 : vector<8x128xf32>
    %569 = arith.addf %565, %568 : vector<8x128xf32>
    %570 = arith.minimumf %538, %569 : vector<8x128xf32>
    %c258 = arith.constant 258 : index
    %571 = memref.load %arg3[%c258] : memref<320xf32, #tpu.memory_space<smem>>
    %572 = vector.broadcast %571 : f32 to vector<8x128xf32>
    %573 = arith.mulf %572, %48 : vector<8x128xf32>
    %c266 = arith.constant 266 : index
    %574 = memref.load %arg3[%c266] : memref<320xf32, #tpu.memory_space<smem>>
    %575 = vector.broadcast %574 : f32 to vector<8x128xf32>
    %576 = arith.mulf %575, %67 : vector<8x128xf32>
    %577 = arith.addf %573, %576 : vector<8x128xf32>
    %c274 = arith.constant 274 : index
    %578 = memref.load %arg3[%c274] : memref<320xf32, #tpu.memory_space<smem>>
    %579 = vector.broadcast %578 : f32 to vector<8x128xf32>
    %580 = arith.mulf %579, %86 : vector<8x128xf32>
    %581 = arith.addf %577, %580 : vector<8x128xf32>
    %c282 = arith.constant 282 : index
    %582 = memref.load %arg3[%c282] : memref<320xf32, #tpu.memory_space<smem>>
    %583 = vector.broadcast %582 : f32 to vector<8x128xf32>
    %584 = arith.mulf %583, %105 : vector<8x128xf32>
    %585 = arith.addf %581, %584 : vector<8x128xf32>
    %c290 = arith.constant 290 : index
    %586 = memref.load %arg3[%c290] : memref<320xf32, #tpu.memory_space<smem>>
    %587 = vector.broadcast %586 : f32 to vector<8x128xf32>
    %588 = arith.mulf %587, %124 : vector<8x128xf32>
    %589 = arith.addf %585, %588 : vector<8x128xf32>
    %c298 = arith.constant 298 : index
    %590 = memref.load %arg3[%c298] : memref<320xf32, #tpu.memory_space<smem>>
    %591 = vector.broadcast %590 : f32 to vector<8x128xf32>
    %592 = arith.mulf %591, %143 : vector<8x128xf32>
    %593 = arith.addf %589, %592 : vector<8x128xf32>
    %c306 = arith.constant 306 : index
    %594 = memref.load %arg3[%c306] : memref<320xf32, #tpu.memory_space<smem>>
    %595 = vector.broadcast %594 : f32 to vector<8x128xf32>
    %596 = arith.mulf %595, %162 : vector<8x128xf32>
    %597 = arith.addf %593, %596 : vector<8x128xf32>
    %c314 = arith.constant 314 : index
    %598 = memref.load %arg3[%c314] : memref<320xf32, #tpu.memory_space<smem>>
    %599 = vector.broadcast %598 : f32 to vector<8x128xf32>
    %600 = arith.mulf %599, %181 : vector<8x128xf32>
    %601 = arith.addf %597, %600 : vector<8x128xf32>
    %602 = arith.minimumf %570, %601 : vector<8x128xf32>
    %c259 = arith.constant 259 : index
    %603 = memref.load %arg3[%c259] : memref<320xf32, #tpu.memory_space<smem>>
    %604 = vector.broadcast %603 : f32 to vector<8x128xf32>
    %605 = arith.mulf %604, %48 : vector<8x128xf32>
    %c267 = arith.constant 267 : index
    %606 = memref.load %arg3[%c267] : memref<320xf32, #tpu.memory_space<smem>>
    %607 = vector.broadcast %606 : f32 to vector<8x128xf32>
    %608 = arith.mulf %607, %67 : vector<8x128xf32>
    %609 = arith.addf %605, %608 : vector<8x128xf32>
    %c275 = arith.constant 275 : index
    %610 = memref.load %arg3[%c275] : memref<320xf32, #tpu.memory_space<smem>>
    %611 = vector.broadcast %610 : f32 to vector<8x128xf32>
    %612 = arith.mulf %611, %86 : vector<8x128xf32>
    %613 = arith.addf %609, %612 : vector<8x128xf32>
    %c283 = arith.constant 283 : index
    %614 = memref.load %arg3[%c283] : memref<320xf32, #tpu.memory_space<smem>>
    %615 = vector.broadcast %614 : f32 to vector<8x128xf32>
    %616 = arith.mulf %615, %105 : vector<8x128xf32>
    %617 = arith.addf %613, %616 : vector<8x128xf32>
    %c291 = arith.constant 291 : index
    %618 = memref.load %arg3[%c291] : memref<320xf32, #tpu.memory_space<smem>>
    %619 = vector.broadcast %618 : f32 to vector<8x128xf32>
    %620 = arith.mulf %619, %124 : vector<8x128xf32>
    %621 = arith.addf %617, %620 : vector<8x128xf32>
    %c299 = arith.constant 299 : index
    %622 = memref.load %arg3[%c299] : memref<320xf32, #tpu.memory_space<smem>>
    %623 = vector.broadcast %622 : f32 to vector<8x128xf32>
    %624 = arith.mulf %623, %143 : vector<8x128xf32>
    %625 = arith.addf %621, %624 : vector<8x128xf32>
    %c307 = arith.constant 307 : index
    %626 = memref.load %arg3[%c307] : memref<320xf32, #tpu.memory_space<smem>>
    %627 = vector.broadcast %626 : f32 to vector<8x128xf32>
    %628 = arith.mulf %627, %162 : vector<8x128xf32>
    %629 = arith.addf %625, %628 : vector<8x128xf32>
    %c315 = arith.constant 315 : index
    %630 = memref.load %arg3[%c315] : memref<320xf32, #tpu.memory_space<smem>>
    %631 = vector.broadcast %630 : f32 to vector<8x128xf32>
    %632 = arith.mulf %631, %181 : vector<8x128xf32>
    %633 = arith.addf %629, %632 : vector<8x128xf32>
    %634 = arith.minimumf %602, %633 : vector<8x128xf32>
    %c260 = arith.constant 260 : index
    %635 = memref.load %arg3[%c260] : memref<320xf32, #tpu.memory_space<smem>>
    %636 = vector.broadcast %635 : f32 to vector<8x128xf32>
    %637 = arith.mulf %636, %48 : vector<8x128xf32>
    %c268 = arith.constant 268 : index
    %638 = memref.load %arg3[%c268] : memref<320xf32, #tpu.memory_space<smem>>
    %639 = vector.broadcast %638 : f32 to vector<8x128xf32>
    %640 = arith.mulf %639, %67 : vector<8x128xf32>
    %641 = arith.addf %637, %640 : vector<8x128xf32>
    %c276 = arith.constant 276 : index
    %642 = memref.load %arg3[%c276] : memref<320xf32, #tpu.memory_space<smem>>
    %643 = vector.broadcast %642 : f32 to vector<8x128xf32>
    %644 = arith.mulf %643, %86 : vector<8x128xf32>
    %645 = arith.addf %641, %644 : vector<8x128xf32>
    %c284 = arith.constant 284 : index
    %646 = memref.load %arg3[%c284] : memref<320xf32, #tpu.memory_space<smem>>
    %647 = vector.broadcast %646 : f32 to vector<8x128xf32>
    %648 = arith.mulf %647, %105 : vector<8x128xf32>
    %649 = arith.addf %645, %648 : vector<8x128xf32>
    %c292 = arith.constant 292 : index
    %650 = memref.load %arg3[%c292] : memref<320xf32, #tpu.memory_space<smem>>
    %651 = vector.broadcast %650 : f32 to vector<8x128xf32>
    %652 = arith.mulf %651, %124 : vector<8x128xf32>
    %653 = arith.addf %649, %652 : vector<8x128xf32>
    %c300 = arith.constant 300 : index
    %654 = memref.load %arg3[%c300] : memref<320xf32, #tpu.memory_space<smem>>
    %655 = vector.broadcast %654 : f32 to vector<8x128xf32>
    %656 = arith.mulf %655, %143 : vector<8x128xf32>
    %657 = arith.addf %653, %656 : vector<8x128xf32>
    %c308 = arith.constant 308 : index
    %658 = memref.load %arg3[%c308] : memref<320xf32, #tpu.memory_space<smem>>
    %659 = vector.broadcast %658 : f32 to vector<8x128xf32>
    %660 = arith.mulf %659, %162 : vector<8x128xf32>
    %661 = arith.addf %657, %660 : vector<8x128xf32>
    %c316 = arith.constant 316 : index
    %662 = memref.load %arg3[%c316] : memref<320xf32, #tpu.memory_space<smem>>
    %663 = vector.broadcast %662 : f32 to vector<8x128xf32>
    %664 = arith.mulf %663, %181 : vector<8x128xf32>
    %665 = arith.addf %661, %664 : vector<8x128xf32>
    %666 = arith.minimumf %634, %665 : vector<8x128xf32>
    %c261 = arith.constant 261 : index
    %667 = memref.load %arg3[%c261] : memref<320xf32, #tpu.memory_space<smem>>
    %668 = vector.broadcast %667 : f32 to vector<8x128xf32>
    %669 = arith.mulf %668, %48 : vector<8x128xf32>
    %c269 = arith.constant 269 : index
    %670 = memref.load %arg3[%c269] : memref<320xf32, #tpu.memory_space<smem>>
    %671 = vector.broadcast %670 : f32 to vector<8x128xf32>
    %672 = arith.mulf %671, %67 : vector<8x128xf32>
    %673 = arith.addf %669, %672 : vector<8x128xf32>
    %c277 = arith.constant 277 : index
    %674 = memref.load %arg3[%c277] : memref<320xf32, #tpu.memory_space<smem>>
    %675 = vector.broadcast %674 : f32 to vector<8x128xf32>
    %676 = arith.mulf %675, %86 : vector<8x128xf32>
    %677 = arith.addf %673, %676 : vector<8x128xf32>
    %c285 = arith.constant 285 : index
    %678 = memref.load %arg3[%c285] : memref<320xf32, #tpu.memory_space<smem>>
    %679 = vector.broadcast %678 : f32 to vector<8x128xf32>
    %680 = arith.mulf %679, %105 : vector<8x128xf32>
    %681 = arith.addf %677, %680 : vector<8x128xf32>
    %c293 = arith.constant 293 : index
    %682 = memref.load %arg3[%c293] : memref<320xf32, #tpu.memory_space<smem>>
    %683 = vector.broadcast %682 : f32 to vector<8x128xf32>
    %684 = arith.mulf %683, %124 : vector<8x128xf32>
    %685 = arith.addf %681, %684 : vector<8x128xf32>
    %c301 = arith.constant 301 : index
    %686 = memref.load %arg3[%c301] : memref<320xf32, #tpu.memory_space<smem>>
    %687 = vector.broadcast %686 : f32 to vector<8x128xf32>
    %688 = arith.mulf %687, %143 : vector<8x128xf32>
    %689 = arith.addf %685, %688 : vector<8x128xf32>
    %c309 = arith.constant 309 : index
    %690 = memref.load %arg3[%c309] : memref<320xf32, #tpu.memory_space<smem>>
    %691 = vector.broadcast %690 : f32 to vector<8x128xf32>
    %692 = arith.mulf %691, %162 : vector<8x128xf32>
    %693 = arith.addf %689, %692 : vector<8x128xf32>
    %c317 = arith.constant 317 : index
    %694 = memref.load %arg3[%c317] : memref<320xf32, #tpu.memory_space<smem>>
    %695 = vector.broadcast %694 : f32 to vector<8x128xf32>
    %696 = arith.mulf %695, %181 : vector<8x128xf32>
    %697 = arith.addf %693, %696 : vector<8x128xf32>
    %698 = arith.minimumf %666, %697 : vector<8x128xf32>
    %c262 = arith.constant 262 : index
    %699 = memref.load %arg3[%c262] : memref<320xf32, #tpu.memory_space<smem>>
    %700 = vector.broadcast %699 : f32 to vector<8x128xf32>
    %701 = arith.mulf %700, %48 : vector<8x128xf32>
    %c270 = arith.constant 270 : index
    %702 = memref.load %arg3[%c270] : memref<320xf32, #tpu.memory_space<smem>>
    %703 = vector.broadcast %702 : f32 to vector<8x128xf32>
    %704 = arith.mulf %703, %67 : vector<8x128xf32>
    %705 = arith.addf %701, %704 : vector<8x128xf32>
    %c278 = arith.constant 278 : index
    %706 = memref.load %arg3[%c278] : memref<320xf32, #tpu.memory_space<smem>>
    %707 = vector.broadcast %706 : f32 to vector<8x128xf32>
    %708 = arith.mulf %707, %86 : vector<8x128xf32>
    %709 = arith.addf %705, %708 : vector<8x128xf32>
    %c286 = arith.constant 286 : index
    %710 = memref.load %arg3[%c286] : memref<320xf32, #tpu.memory_space<smem>>
    %711 = vector.broadcast %710 : f32 to vector<8x128xf32>
    %712 = arith.mulf %711, %105 : vector<8x128xf32>
    %713 = arith.addf %709, %712 : vector<8x128xf32>
    %c294 = arith.constant 294 : index
    %714 = memref.load %arg3[%c294] : memref<320xf32, #tpu.memory_space<smem>>
    %715 = vector.broadcast %714 : f32 to vector<8x128xf32>
    %716 = arith.mulf %715, %124 : vector<8x128xf32>
    %717 = arith.addf %713, %716 : vector<8x128xf32>
    %c302 = arith.constant 302 : index
    %718 = memref.load %arg3[%c302] : memref<320xf32, #tpu.memory_space<smem>>
    %719 = vector.broadcast %718 : f32 to vector<8x128xf32>
    %720 = arith.mulf %719, %143 : vector<8x128xf32>
    %721 = arith.addf %717, %720 : vector<8x128xf32>
    %c310 = arith.constant 310 : index
    %722 = memref.load %arg3[%c310] : memref<320xf32, #tpu.memory_space<smem>>
    %723 = vector.broadcast %722 : f32 to vector<8x128xf32>
    %724 = arith.mulf %723, %162 : vector<8x128xf32>
    %725 = arith.addf %721, %724 : vector<8x128xf32>
    %c318 = arith.constant 318 : index
    %726 = memref.load %arg3[%c318] : memref<320xf32, #tpu.memory_space<smem>>
    %727 = vector.broadcast %726 : f32 to vector<8x128xf32>
    %728 = arith.mulf %727, %181 : vector<8x128xf32>
    %729 = arith.addf %725, %728 : vector<8x128xf32>
    %730 = arith.minimumf %698, %729 : vector<8x128xf32>
    %c263 = arith.constant 263 : index
    %731 = memref.load %arg3[%c263] : memref<320xf32, #tpu.memory_space<smem>>
    %732 = vector.broadcast %731 : f32 to vector<8x128xf32>
    %733 = arith.mulf %732, %48 : vector<8x128xf32>
    %c271 = arith.constant 271 : index
    %734 = memref.load %arg3[%c271] : memref<320xf32, #tpu.memory_space<smem>>
    %735 = vector.broadcast %734 : f32 to vector<8x128xf32>
    %736 = arith.mulf %735, %67 : vector<8x128xf32>
    %737 = arith.addf %733, %736 : vector<8x128xf32>
    %c279 = arith.constant 279 : index
    %738 = memref.load %arg3[%c279] : memref<320xf32, #tpu.memory_space<smem>>
    %739 = vector.broadcast %738 : f32 to vector<8x128xf32>
    %740 = arith.mulf %739, %86 : vector<8x128xf32>
    %741 = arith.addf %737, %740 : vector<8x128xf32>
    %c287 = arith.constant 287 : index
    %742 = memref.load %arg3[%c287] : memref<320xf32, #tpu.memory_space<smem>>
    %743 = vector.broadcast %742 : f32 to vector<8x128xf32>
    %744 = arith.mulf %743, %105 : vector<8x128xf32>
    %745 = arith.addf %741, %744 : vector<8x128xf32>
    %c295 = arith.constant 295 : index
    %746 = memref.load %arg3[%c295] : memref<320xf32, #tpu.memory_space<smem>>
    %747 = vector.broadcast %746 : f32 to vector<8x128xf32>
    %748 = arith.mulf %747, %124 : vector<8x128xf32>
    %749 = arith.addf %745, %748 : vector<8x128xf32>
    %c303 = arith.constant 303 : index
    %750 = memref.load %arg3[%c303] : memref<320xf32, #tpu.memory_space<smem>>
    %751 = vector.broadcast %750 : f32 to vector<8x128xf32>
    %752 = arith.mulf %751, %143 : vector<8x128xf32>
    %753 = arith.addf %749, %752 : vector<8x128xf32>
    %c311 = arith.constant 311 : index
    %754 = memref.load %arg3[%c311] : memref<320xf32, #tpu.memory_space<smem>>
    %755 = vector.broadcast %754 : f32 to vector<8x128xf32>
    %756 = arith.mulf %755, %162 : vector<8x128xf32>
    %757 = arith.addf %753, %756 : vector<8x128xf32>
    %c319 = arith.constant 319 : index
    %758 = memref.load %arg3[%c319] : memref<320xf32, #tpu.memory_space<smem>>
    %759 = vector.broadcast %758 : f32 to vector<8x128xf32>
    %760 = arith.mulf %759, %181 : vector<8x128xf32>
    %761 = arith.addf %757, %760 : vector<8x128xf32>
    %762 = arith.minimumf %730, %761 : vector<8x128xf32>
    %c6_24 = arith.constant 6 : index
    %c0_25 = arith.constant 0 : index
    %c0_26 = arith.constant 0 : index
    %763 = vector.load %arg5[%c6_24, %c0_25, %c0_26] : memref<7x8x128xf32, #tpu.memory_space<vmem>>, vector<1x8x128xf32>
    %764 = vector.shape_cast %763 : vector<1x8x128xf32> to vector<8x128xf32>
    %765 = vector.shape_cast %762 : vector<8x128xf32> to vector<1x8x128xf32>
    tpu.vector_store %arg5[%c6_24, %c0_25, %c0_26], %765 {strides = array<i32>} : memref<7x8x128xf32, #tpu.memory_space<vmem>>, vector<1x8x128xf32>,
    return
  }
  func.func @transform_0(%arg0: i32) -> (i32, i32, i32) {
    %c0_i32 = arith.constant 0 : i32
    %c0_i32_0 = arith.constant 0 : i32
    %c0_i32_1 = arith.constant 0 : i32
    return %c0_i32, %c0_i32_0, %arg0 : i32, i32, i32
  }
  func.func @transform_1(%arg0: i32) -> (i32, i32, i32) {
    %c0_i32 = arith.constant 0 : i32
    %c0_i32_0 = arith.constant 0 : i32
    %c0_i32_1 = arith.constant 0 : i32
    %c0_i32_2 = arith.constant 0 : i32
    return %c0_i32, %c0_i32_0, %c0_i32_1 : i32, i32, i32
  }
  func.func @transform_2(%arg0: i32) -> i32 {
    %c0_i32 = arith.constant 0 : i32
    %c0_i32_0 = arith.constant 0 : i32
    return %c0_i32 : i32
  }
  func.func @transform_3(%arg0: i32) -> i32 {
    %c0_i32 = arith.constant 0 : i32
    %c0_i32_0 = arith.constant 0 : i32
    return %c0_i32 : i32
  }
  func.func @transform_4(%arg0: i32) -> (i32, i32, i32) {
    %c0_i32 = arith.constant 0 : i32
    %c0_i32_0 = arith.constant 0 : i32
    %c0_i32_1 = arith.constant 0 : i32
    return %c0_i32, %c0_i32_0, %arg0 : i32, i32, i32
  }
}

</mosaic_0001>

<llo_original>
// kernel: tpu_custom_call.1
$region0: #{tpu_custom_call.1}
  #allocation0 [shape = 'u32[]', space=smem, size = 0x4, offset = 0x4, fixed_abs, tag = 'smem constant byte address 0x4 - core index']
  #allocation1 [shape = 'u32[144,128]{1,0:T(1,128)}', space=vmem, size = 0x12000, scoped, tag = 'internal scratch']
  %s0 = inlined_call_operand.hbm [shape: f32[4,8,256], index: 0, kind: input, shape index: {}]
  %s1 = inlined_call_operand.hbm [shape: f32[5,8,8], index: 1, kind: input, shape index: {}]
  %s2 = inlined_call_operand.hbm [shape: f32[320], index: 2, kind: input, shape index: {}]
  %s3 = inlined_call_operand.vmem [shape: f32[16], index: 3, kind: input, shape index: {}]
  %s4 = inlined_call_operand.hbm [shape: f32[7,8,256], index: 4, kind: output, shape index: {}]
  %s5 = sld [smem:[#allocation0]]
  $region65: #{tpu_custom_call.1} parent=0
    _
  %s7 = ssub.s32 1, %s5
  %s8 = scalar_select 0, %s7, %s5
  $region1: #{tpu_custom_call.1} parent=0
    #allocation2 [shape = 'u8[32768]{0}', space=vmem, size = 0x8000, scoped, tag = 'input window, operand 0']
    #allocation3 [shape = 's32[2]{0}', space=sflag, size = 0x8, scoped, tag = 'scoped memory for tpu_custom_call.1']
    #allocation4 [shape = 's32[2]{0}', space=sflag, size = 0x8, scoped, tag = 'scoped memory for tpu_custom_call.1']
    #allocation5 [shape = 's32[2]{0}', space=sflag, size = 0x8, scoped, tag = 'scoped memory for tpu_custom_call.1']
    #allocation6 [shape = 's32[2]{0}', space=sflag, size = 0x8, scoped, tag = 'scoped memory for tpu_custom_call.1']
    #allocation7 [shape = 'u8[20480]{0}', space=vmem, size = 0x5000, scoped, tag = 'input window, operand 1, single buffered']
    #allocation8 [shape = 's32[1]{0}', space=sflag, size = 0x4, scoped, tag = 'scoped memory for tpu_custom_call.1']
    #allocation9 [shape = 'u8[1536]{0}', space=smem, size = 0x600, scoped, tag = 'input window, operand 2, single buffered']
    #allocation10 [shape = 'u8[512]{0}', space=smem, size = 0x200, scoped, tag = 'input window, operand 3, single buffered']
    #allocation11 [shape = 'u8[57344]{0}', space=vmem, size = 0xe000, scoped, tag = 'output window, operand 0']
    %9 = vsyncpa [#allocation3], 0
    %s10 = scalar_lea.sflag [#allocation3], 1
    %11 = vsyncpa %s10, 0
    %12 = vsyncpa [#allocation8], 0
    %13 = vsyncpa [#allocation5], 0
    %14 = vsyncpa [#allocation6], 0
    %15 = vsyncpa [#allocation4], 0
    %s16 = scalar_lea.sflag [#allocation4], 1
    %17 = vsyncpa %s16, 0
    loop: start=0, step=1, limit=4
    $region2: #{tpu_custom_call.1} parent=1 // loop_pre_header
      _
    $region3: #{tpu_custom_call.1} parent=1 // loop_header
      %s19 = sphi 0, %s23
      %p20 = scmp.ge.s32.totalorder %s19, 4
      %s29 = sphi 0, %s31
      %s32 = sphi 0, %s29
      %s33 = sphi 0, %s32
      %s49 = sphi 0, %s33
      %s53 = sphi 0, %s53
      %s55 = sphi 0, %s53
      %s56 = sphi 0, %s55
      %s70 = sphi 0, %s56
      %s74 = sphi 0, %s74
      %s76 = sphi 0, %s74
      %s77 = sphi 0, %s76
      %s91 = sphi 0, %s77
      %s95 = sphi 0, %s95
      %s97 = sphi 0, %s95
      %s98 = sphi 0, %s97
      %s112 = sphi 0, %s98
      %s118 = sphi 0, %s120
      %s121 = sphi 0, %s118
      %s122 = sphi 0, %s121
      %s138 = sphi 0, %s122
    $region4: #{tpu_custom_call.1} parent=1 // loop_header_branch
      %22 = sbr.rel (%p20) target = $region8
    $region5: #{tpu_custom_call.1} parent=1 // loop_body
      %s24 = ssub.s32 %s19, 1
      %s25 = ssub.s32 %s19, 2
      %s26 = sadd.s32 %s19, 1
      %s27 = ssub.s32 %s19, %s26
      %p28 = scmp.eq.s32.totalorder %s27, 0
      %s30 = sadd.s32 %s29, 1
      %s31 = scalar_select %p28, %s29, %s30
      %p34 = pneg %p28
      %p35 = scmp.eq.s32.totalorder %s19, 1
      %p36 = por %p34, %p35
      %p37 = scmp.ne.s32.totalorder %s29, %s32
      %p38 = scmp.eq.s32.totalorder %s19, 0
      %p39 = por %p37, %p38
      %p40 = scmp.ne.s32.totalorder %s29, %s32
      %p41 = scmp.eq.s32.totalorder %s24, 1
      %p42 = por %p40, %p41
      %p43 = scmp.ne.s32.totalorder %s32, %s33
      %p44 = scmp.eq.s32.totalorder %s24, 0
      %p45 = por %p43, %p44
      %p46 = scmp.ne.s32.totalorder %s32, %s33
      %p47 = scmp.eq.s32.totalorder %s25, 1
      %p48 = por %p46, %p47
      %p50 = scmp.ne.s32.totalorder %s33, %s49
      %p51 = scmp.eq.s32.totalorder %s25, 0
      %p52 = por %p50, %p51
      %s54 = sadd.s32 %s53, 1
      %p57 = scmp.eq.s32.totalorder %s19, 1
      %p58 = scmp.ne.s32.totalorder %s53, %s55
      %p59 = scmp.eq.s32.totalorder %s19, 0
      %p60 = por %p58, %p59
      %p61 = scmp.ne.s32.totalorder %s53, %s55
      %p62 = scmp.eq.s32.totalorder %s24, 1
      %p63 = por %p61, %p62
      %p64 = scmp.ne.s32.totalorder %s55, %s56
      %p65 = scmp.eq.s32.totalorder %s24, 0
      %p66 = por %p64, %p65
      %p67 = scmp.ne.s32.totalorder %s55, %s56
      %p68 = scmp.eq.s32.totalorder %s25, 1
      %p69 = por %p67, %p68
      %p71 = scmp.ne.s32.totalorder %s56, %s70
      %p72 = scmp.eq.s32.totalorder %s25, 0
      %p73 = por %p71, %p72
      %s75 = sadd.s32 %s74, 1
      %p78 = scmp.eq.s32.totalorder %s19, 1
      %p79 = scmp.ne.s32.totalorder %s74, %s76
      %p80 = scmp.eq.s32.totalorder %s19, 0
      %p81 = por %p79, %p80
      %p82 = scmp.ne.s32.totalorder %s74, %s76
      %p83 = scmp.eq.s32.totalorder %s24, 1
      %p84 = por %p82, %p83
      %p85 = scmp.ne.s32.totalorder %s76, %s77
      %p86 = scmp.eq.s32.totalorder %s24, 0
      %p87 = por %p85, %p86
      %p88 = scmp.ne.s32.totalorder %s76, %s77
      %p89 = scmp.eq.s32.totalorder %s25, 1
      %p90 = por %p88, %p89
      %p92 = scmp.ne.s32.totalorder %s77, %s91
      %p93 = scmp.eq.s32.totalorder %s25, 0
      %p94 = por %p92, %p93
      %s96 = sadd.s32 %s95, 1
      %p99 = scmp.eq.s32.totalorder %s19, 1
      %p100 = scmp.ne.s32.totalorder %s95, %s97
      %p101 = scmp.eq.s32.totalorder %s19, 0
      %p102 = por %p100, %p101
      %p103 = scmp.ne.s32.totalorder %s95, %s97
      %p104 = scmp.eq.s32.totalorder %s24, 1
      %p105 = por %p103, %p104
      %p106 = scmp.ne.s32.totalorder %s97, %s98
      %p107 = scmp.eq.s32.totalorder %s24, 0
      %p108 = por %p106, %p107
      %p109 = scmp.ne.s32.totalorder %s97, %s98
      %p110 = scmp.eq.s32.totalorder %s25, 1
      %p111 = por %p109, %p110
      %p113 = scmp.ne.s32.totalorder %s98, %s112
      %p114 = scmp.eq.s32.totalorder %s25, 0
      %p115 = por %p113, %p114
      %s116 = ssub.s32 %s19, %s26
      %p117 = scmp.eq.s32.totalorder %s116, 0
      %s119 = sadd.s32 %s118, 1
      %s120 = scalar_select %p117, %s118, %s119
      %p123 = pneg %p117
      %p124 = scmp.eq.s32.totalorder %s19, 1
      %p125 = por %p123, %p124
      %p126 = scmp.ne.s32.totalorder %s118, %s121
      %p127 = scmp.eq.s32.totalorder %s19, 0
      %p128 = por %p126, %p127
      %p129 = scmp.ne.s32.totalorder %s118, %s121
      %p130 = scmp.eq.s32.totalorder %s24, 1
      %p131 = por %p129, %p130
      %p132 = scmp.ne.s32.totalorder %s121, %s122
      %p133 = scmp.eq.s32.totalorder %s24, 0
      %p134 = por %p132, %p133
      %p135 = scmp.ne.s32.totalorder %s121, %s122
      %p136 = scmp.eq.s32.totalorder %s25, 1
      %p137 = por %p135, %p136
      %p139 = scmp.ne.s32.totalorder %s122, %s138
      %p140 = scmp.eq.s32.totalorder %s25, 0
      %p141 = por %p139, %p140
      %p142 = scmp.le.s32.totalorder 1, %s19
      %p143 = scmp.lt.s32.totalorder %s19, 3
      %p144 = pnand %p142, %p143
      %p145 = pneg %p144
      // Predicated region
      $region9: #{tpu_custom_call.1} parent=5 // pred_check
        _
      $region10: #{tpu_custom_call.1} parent=5 // pred_check_branch
        %147 = sbr.rel (%p144) target = $region12
      $region11: #{tpu_custom_call.1} parent=5 // pred_region
        %s148 = ssub.s32 %s19, 1
        // Predicated region
        $region13: #{tpu_custom_call.1} parent=11 // pred_check
          %p149 = pneg %p66
        $region14: #{tpu_custom_call.1} parent=11 // pred_check_branch
          %151 = sbr.rel (%p149) target = $region16
        $region15: #{tpu_custom_call.1} parent=11 // pred_region
          %s153 = ssub.s32 640, 640
          %154 = vsyncadd [#allocation8], %s153
          %s155 = sshll.u32 [#allocation7], 4
          %s156 = int_to_ptr.vmem [resolvable:$true] %s155
          %161 = dma.hbm_to_vmem [thread:$0]  %s1, 640, %s156, [#allocation8], 128, 128, 8
        $region16: #{tpu_custom_call.1} parent=11 // pred_fallthru
          _
        // Predicated region
        $region17: #{tpu_custom_call.1} parent=11 // pred_check
          %p162 = pneg %p87
        $region18: #{tpu_custom_call.1} parent=11 // pred_check_branch
          %164 = sbr.rel (%p162) target = $region20
        $region19: #{tpu_custom_call.1} parent=11 // pred_region
          %s166 = ssub.s32 48, 48
          %167 = vsyncadd [#allocation5], %s166
          %170 = dma.hbm_to_smem %s2, 48, [#allocation9], [#allocation5]
        $region20: #{tpu_custom_call.1} parent=11 // pred_fallthru
          _
        // Predicated region
        $region21: #{tpu_custom_call.1} parent=11 // pred_check
          %p171 = pneg %p108
        $region22: #{tpu_custom_call.1} parent=11 // pred_check_branch
          %173 = sbr.rel (%p171) target = $region24
        $region23: #{tpu_custom_call.1} parent=11 // pred_region
          %s175 = ssub.s32 16, 16
          %176 = vsyncadd [#allocation6], %s175
          %s178 = sshll.u32 %s3, 4
          %s179 = int_to_ptr.vmem [resolvable:$true] %s178
          %181 = dma.vmem_to_smem %s179, 16, [#allocation10], [#allocation6]
        $region24: #{tpu_custom_call.1} parent=11 // pred_fallthru
          _
      $region12: #{tpu_custom_call.1} parent=5 // pred_fallthru
        _
      %p182 = scmp.lt.s32.totalorder %s19, 2
      // Predicated region
      $region25: #{tpu_custom_call.1} parent=5 // pred_check
        %p183 = pneg %p182
      $region26: #{tpu_custom_call.1} parent=5 // pred_check_branch
        %185 = sbr.rel (%p183) target = $region28
      $region27: #{tpu_custom_call.1} parent=5 // pred_region
        // Predicated region
        $region29: #{tpu_custom_call.1} parent=27 // pred_check
          %p186 = pneg %p39
        $region30: #{tpu_custom_call.1} parent=27 // pred_check_branch
          %188 = sbr.rel (%p186) target = $region32
        $region31: #{tpu_custom_call.1} parent=27 // pred_region
          %s189 = sand.u32 %s29, 1
          %s190 = scalar_lea.sflag [#allocation3], %s189
          %s191 = sand.u32 %s29, 1
          %s192 = smul.addr %s191, 32
          %s193 = scalar_lea.vmem [#allocation2], %s192
          %s195 = ssub.s32 512, 512
          %196 = vsyncadd %s190, %s195
          %s197 = smul.addr %s19, 128
          %s198 = scalar_lea.hbm %s0, %s197
          %s199 = sshll.u32 %s193, 4
          %s200 = int_to_ptr.vmem [resolvable:$true] %s199
          %205 = dma.hbm_to_vmem [thread:$0]  %s198, 512, %s200, %s190, 256, 128, 8
        $region32: #{tpu_custom_call.1} parent=27 // pred_fallthru
          _
      $region28: #{tpu_custom_call.1} parent=5 // pred_fallthru
        _
      %p206 = scmp.le.s32.totalorder 1, %s19
      %p207 = scmp.lt.s32.totalorder %s19, 3
      %p208 = pnand %p206, %p207
      %p209 = pneg %p208
      // Predicated region
      $region33: #{tpu_custom_call.1} parent=5 // pred_check
        _
      $region34: #{tpu_custom_call.1} parent=5 // pred_check_branch
        %211 = sbr.rel (%p208) target = $region36
      $region35: #{tpu_custom_call.1} parent=5 // pred_region
        %s212 = ssub.s32 %s19, 1
        %s213 = sand.u32 %s32, 1
        %s214 = scalar_lea.sflag [#allocation3], %s213
        %s215 = sand.u32 %s32, 1
        %s216 = smul.addr %s215, 32
        %s217 = scalar_lea.vmem [#allocation2], %s216
        // Predicated region
        $region37: #{tpu_custom_call.1} parent=35 // pred_check
          %p218 = pneg %p45
        $region38: #{tpu_custom_call.1} parent=35 // pred_check_branch
          %220 = sbr.rel (%p218) target = $region40
        $region39: #{tpu_custom_call.1} parent=35 // pred_region
          %221 = dma.done %s214, 512
        $region40: #{tpu_custom_call.1} parent=35 // pred_fallthru
          _
        // Predicated region
        $region41: #{tpu_custom_call.1} parent=35 // pred_check
          %p222 = pneg %p66
        $region42: #{tpu_custom_call.1} parent=35 // pred_check_branch
          %224 = sbr.rel (%p222) target = $region44
        $region43: #{tpu_custom_call.1} parent=35 // pred_region
          %225 = dma.done [#allocation8], 640
        $region44: #{tpu_custom_call.1} parent=35 // pred_fallthru
          _
        // Predicated region
        $region45: #{tpu_custom_call.1} parent=35 // pred_check
          %p226 = pneg %p87
        $region46: #{tpu_custom_call.1} parent=35 // pred_check_branch
          %228 = sbr.rel (%p226) target = $region48
        $region47: #{tpu_custom_call.1} parent=35 // pred_region
          %229 = dma.done [#allocation5], 48
        $region48: #{tpu_custom_call.1} parent=35 // pred_fallthru
          _
        // Predicated region
        $region49: #{tpu_custom_call.1} parent=35 // pred_check
          %p230 = pneg %p108
        $region50: #{tpu_custom_call.1} parent=35 // pred_check_branch
          %232 = sbr.rel (%p230) target = $region52
        $region51: #{tpu_custom_call.1} parent=35 // pred_region
          %233 = dma.done [#allocation6], 16
        $region52: #{tpu_custom_call.1} parent=35 // pred_fallthru
          _
        %234 = sfence
        %s235 = sand.u32 %s32, 1
        %s236 = scalar_lea.sflag [#allocation3], %s235
        %s237 = sand.u32 %s32, 1
        %s238 = smul.addr %s237, 32
        %s239 = scalar_lea.vmem [#allocation2], %s238
        %p240 = pneg %p45
        %p241 = pneg %p42
        %p242 = pneg %p66
        %p243 = pneg %p63
        %p244 = pneg %p87
        %p245 = pneg %p84
        %p246 = pneg %p108
        %p247 = pneg %p105
        %p248 = pneg %p134
        %p249 = pneg %p131
        %s250 = sand.u32 %s121, 1
        %s251 = scalar_lea.sflag [#allocation4], %s250
        %s252 = sand.u32 %s121, 1
        %s253 = smul.addr %s252, 56
        %s254 = scalar_lea.vmem [#allocation11], %s253
        %v255 = vld [vmem:[%s217] sm:$0xff]
        %v256 = vld [vmem:[%s217 + $0x8] sm:$0xff]
        %v257 = vld [vmem:[%s217 + $0x10] sm:$0xff]
        %v258 = vld [vmem:[%s217 + $0x18] sm:$0xff]
        %v259 = vmul.f32 %v255, %v255
        %v260 = vmul.f32 %v256, %v256
        %v261 = vmul.f32 %v257, %v257
        %v262 = vmul.f32 %v258, %v258
        %v263 = vadd.f32 %v260, %v261
        %v264 = vadd.f32 %v263, %v262
        %v265 = vsub.f32 %v264, %v259
        %v266 = vrsqrt.pop %v263
        %v267 = vmul.f32 %v263, %v266
        %vm268 = vcmp.eq.f32.partialorder %v263, inf
        %v269 = vsel %vm268, %v263, %v267
        %vm270 = vcmp.eq.f32.partialorder %v263, 0.0
        %v271 = vand.u32 %v263, 2147483648
        %v272 = vsel %vm270, %v271, %v269
        %273 = vst [vmem:[%s254] sm:$0xff] %v265
        %s274 = scalar_lea.vmem %s254, 8 [#allocation11]
        %275 = vst [vmem:[%s274] sm:$0xff] %v272
        %v276 = vld [vmem:[#allocation7] sm:$0xff]
        %vm277 = vcmask 64512
        %v279 = vsel %vm277, %v276, 0
        %281 = vmatprep.subr.mxu0 0.0
        %282 = vmatpush1.msra.mxu0 0.0
        %283 = vmatprep.subr.mxu0 0.0
        %284 = vmatpush1.msra.mxu0 0.0
        %285 = vmatprep.subr.mxu0 0.0
        %286 = vmatpush1.msra.mxu0 0.0
        %287 = vmatprep.subr.mxu0 0.0
        %288 = vmatpush1.msra.mxu0 0.0
        %289 = vmatprep.subr.mxu0 0.0
        %290 = vmatpush1.msra.mxu0 0.0
        %291 = vmatprep.subr.mxu0 0.0
        %292 = vmatpush1.msra.mxu0 0.0
        %293 = vmatprep.subr.mxu0 0.0
        %294 = vmatpush1.msra.mxu0 0.0
        %295 = vmatprep.subr.mxu0 0.0
        %296 = vmatpush1.msra.mxu0 0.0
        %297 = vmatprep.subr.mxu0 0.0
        %298 = vmatpush1.msra.mxu0 0.0
        %299 = vmatprep.subr.mxu0 0.0
        %300 = vmatpush1.msra.mxu0 0.0
        %301 = vmatprep.subr.mxu0 0.0
        %302 = vmatpush1.msra.mxu0 0.0
        %303 = vmatprep.subr.mxu0 0.0
        %304 = vmatpush1.msra.mxu0 0.0
        %305 = vmatprep.subr.mxu0 0.0
        %306 = vmatpush1.msra.mxu0 0.0
        %307 = vmatprep.subr.mxu0 0.0
        %308 = vmatpush1.msra.mxu0 0.0
        %309 = vmatprep.subr.mxu0 0.0
        %310 = vmatpush1.msra.mxu0 0.0
        %311 = vmatprep.subr.mxu0 0.0
        %312 = vmatpush1.msra.mxu0 %v255
        %313 = vmatprep.subr.mxu0 0.0
        %314 = vmatpush2.msra.mxu0 0.0
        %315 = vmatprep.subr.mxu0 0.0
        %316 = vmatpush2.msra.mxu0 0.0
        %317 = vmatprep.subr.mxu0 0.0
        %318 = vmatpush2.msra.mxu0 0.0
        %319 = vmatprep.subr.mxu0 0.0
        %320 = vmatpush2.msra.mxu0 0.0
        %321 = vmatprep.subr.mxu0 0.0
        %322 = vmatpush2.msra.mxu0 0.0
        %323 = vmatprep.subr.mxu0 0.0
        %324 = vmatpush2.msra.mxu0 0.0
        %325 = vmatprep.subr.mxu0 0.0
        %326 = vmatpush2.msra.mxu0 0.0
        %327 = vmatprep.subr.mxu0 0.0
        %328 = vmatpush2.msra.mxu0 0.0
        %329 = vmatprep.subr.mxu0 0.0
        %330 = vmatpush2.msra.mxu0 0.0
        %331 = vmatprep.subr.mxu0 0.0
        %332 = vmatpush2.msra.mxu0 0.0
        %333 = vmatprep.subr.mxu0 0.0
        %334 = vmatpush2.msra.mxu0 0.0
        %335 = vmatprep.subr.mxu0 0.0
        %336 = vmatpush2.msra.mxu0 0.0
        %337 = vmatprep.subr.mxu0 0.0
        %338 = vmatpush2.msra.mxu0 0.0
        %339 = vmatprep.subr.mxu0 0.0
        %340 = vmatpush2.msra.mxu0 0.0
        %341 = vmatprep.subr.mxu0 0.0
        %342 = vmatpush2.msra.mxu0 0.0
        %343 = vmatprep.subr.mxu0 0.0
        %344 = vmatpush2.msra.mxu0 0.0
        %345 = vmatprep.mubr.f32.mxu0 0.0
        %346 = vmatmul.mubr.f32.gmra.mxu0 %v279
        %v347 = vpop.f32.mrf.mxu0
        %v348 = vadd.f32 0.0, %v347
        %v349 = vpop.f32.mrf.mxu0
        %350 = vdwg.mxu0
        %s351 = scalar_lea.vmem %s254, 16 [#allocation11]
        %352 = vst [vmem:[%s351] sm:$0xff] %v348
        %v353 = vlaneseq
        %v354 = vshrl.u32 %v353, 7
        %v355 = vsub.s32 0, %v354
        %v356 = vrot.slane %v255, %v355
        %v357 = vsub.f32 %v255, %v356
        %v358 = vlaneseq
        %v359 = vshrl.u32 %v358, 7
        %v360 = vsub.s32 0, %v359
        %v361 = vrot.slane %v256, %v360
        %v362 = vsub.f32 %v256, %v361
        %v363 = vlaneseq
        %v364 = vshrl.u32 %v363, 7
        %v365 = vsub.s32 0, %v364
        %v366 = vrot.slane %v257, %v365
        %v367 = vsub.f32 %v257, %v366
        %v368 = vlaneseq
        %v369 = vshrl.u32 %v368, 7
        %v370 = vsub.s32 0, %v369
        %v371 = vrot.slane %v258, %v370
        %v372 = vsub.f32 %v258, %v371
        %v373 = vmul.f32 %v362, %v362
        %v374 = vmul.f32 %v367, %v367
        %v375 = vadd.f32 %v373, %v374
        %v376 = vmul.f32 %v372, %v372
        %v377 = vadd.f32 %v375, %v376
        %v378 = vmul.f32 %v357, %v357
        %v379 = vsub.f32 %v377, %v378
        %v380 = vlaneseq
        %v381 = vshrl.u32 %v380, 7
        %v382 = vsub.s32 1, %v381
        %v383 = vrot.slane %v255, %v382
        %v384 = vsub.f32 %v255, %v383
        %v385 = vlaneseq
        %v386 = vshrl.u32 %v385, 7
        %v387 = vsub.s32 1, %v386
        %v388 = vrot.slane %v256, %v387
        %v389 = vsub.f32 %v256, %v388
        %v390 = vlaneseq
        %v391 = vshrl.u32 %v390, 7
        %v392 = vsub.s32 1, %v391
        %v393 = vrot.slane %v257, %v392
        %v394 = vsub.f32 %v257, %v393
        %v395 = vlaneseq
        %v396 = vshrl.u32 %v395, 7
        %v397 = vsub.s32 1, %v396
        %v398 = vrot.slane %v258, %v397
        %v399 = vsub.f32 %v258, %v398
        %v400 = vmul.f32 %v389, %v389
        %v401 = vmul.f32 %v394, %v394
        %v402 = vadd.f32 %v400, %v401
        %v403 = vmul.f32 %v399, %v399
        %v404 = vadd.f32 %v402, %v403
        %v405 = vmul.f32 %v384, %v384
        %v406 = vsub.f32 %v404, %v405
        %v407 = vlaneseq
        %v408 = vshrl.u32 %v407, 7
        %v409 = vsub.s32 2, %v408
        %v410 = vrot.slane %v255, %v409
        %v411 = vsub.f32 %v255, %v410
        %v412 = vlaneseq
        %v413 = vshrl.u32 %v412, 7
        %v414 = vsub.s32 2, %v413
        %v415 = vrot.slane %v256, %v414
        %v416 = vsub.f32 %v256, %v415
        %v417 = vlaneseq
        %v418 = vshrl.u32 %v417, 7
        %v419 = vsub.s32 2, %v418
        %v420 = vrot.slane %v257, %v419
        %v421 = vsub.f32 %v257, %v420
        %v422 = vlaneseq
        %v423 = vshrl.u32 %v422, 7
        %v424 = vsub.s32 2, %v423
        %v425 = vrot.slane %v258, %v424
        %v426 = vsub.f32 %v258, %v425
        %v427 = vmul.f32 %v416, %v416
        %v428 = vmul.f32 %v421, %v421
        %v429 = vadd.f32 %v427, %v428
        %v430 = vmul.f32 %v426, %v426
        %v431 = vadd.f32 %v429, %v430
        %v432 = vmul.f32 %v411, %v411
        %v433 = vsub.f32 %v431, %v432
        %v434 = vlaneseq
        %v435 = vshrl.u32 %v434, 7
        %v436 = vsub.s32 3, %v435
        %v437 = vrot.slane %v255, %v436
        %v438 = vsub.f32 %v255, %v437
        %v439 = vlaneseq
        %v440 = vshrl.u32 %v439, 7
        %v441 = vsub.s32 3, %v440
        %v442 = vrot.slane %v256, %v441
        %v443 = vsub.f32 %v256, %v442
        %v444 = vlaneseq
        %v445 = vshrl.u32 %v444, 7
        %v446 = vsub.s32 3, %v445
        %v447 = vrot.slane %v257, %v446
        %v448 = vsub.f32 %v257, %v447
        %v449 = vlaneseq
        %v450 = vshrl.u32 %v449, 7
        %v451 = vsub.s32 3, %v450
        %v452 = vrot.slane %v258, %v451
        %v453 = vsub.f32 %v258, %v452
        %v454 = vmul.f32 %v443, %v443
        %v455 = vmul.f32 %v448, %v448
        %v456 = vadd.f32 %v454, %v455
        %v457 = vmul.f32 %v453, %v453
        %v458 = vadd.f32 %v456, %v457
        %v459 = vmul.f32 %v438, %v438
        %v460 = vsub.f32 %v458, %v459
        %v461 = vlaneseq
        %v462 = vshrl.u32 %v461, 7
        %v463 = vsub.s32 4, %v462
        %v464 = vrot.slane %v255, %v463
        %v465 = vsub.f32 %v255, %v464
        %v466 = vlaneseq
        %v467 = vshrl.u32 %v466, 7
        %v468 = vsub.s32 4, %v467
        %v469 = vrot.slane %v256, %v468
        %v470 = vsub.f32 %v256, %v469
        %v471 = vlaneseq
        %v472 = vshrl.u32 %v471, 7
        %v473 = vsub.s32 4, %v472
        %v474 = vrot.slane %v257, %v473
        %v475 = vsub.f32 %v257, %v474
        %v476 = vlaneseq
        %v477 = vshrl.u32 %v476, 7
        %v478 = vsub.s32 4, %v477
        %v479 = vrot.slane %v258, %v478
        %v480 = vsub.f32 %v258, %v479
        %v481 = vmul.f32 %v470, %v470
        %v482 = vmul.f32 %v475, %v475
        %v483 = vadd.f32 %v481, %v482
        %v484 = vmul.f32 %v480, %v480
        %v485 = vadd.f32 %v483, %v484
        %v486 = vmul.f32 %v465, %v465
        %v487 = vsub.f32 %v485, %v486
        %v488 = vlaneseq
        %v489 = vshrl.u32 %v488, 7
        %v490 = vsub.s32 5, %v489
        %v491 = vrot.slane %v255, %v490
        %v492 = vsub.f32 %v255, %v491
        %v493 = vlaneseq
        %v494 = vshrl.u32 %v493, 7
        %v495 = vsub.s32 5, %v494
        %v496 = vrot.slane %v256, %v495
        %v497 = vsub.f32 %v256, %v496
        %v498 = vlaneseq
        %v499 = vshrl.u32 %v498, 7
        %v500 = vsub.s32 5, %v499
        %v501 = vrot.slane %v257, %v500
        %v502 = vsub.f32 %v257, %v501
        %v503 = vlaneseq
        %v504 = vshrl.u32 %v503, 7
        %v505 = vsub.s32 5, %v504
        %v506 = vrot.slane %v258, %v505
        %v507 = vsub.f32 %v258, %v506
        %v508 = vmul.f32 %v497, %v497
        %v509 = vmul.f32 %v502, %v502
        %v510 = vadd.f32 %v508, %v509
        %v511 = vmul.f32 %v507, %v507
        %v512 = vadd.f32 %v510, %v511
        %v513 = vmul.f32 %v492, %v492
        %v514 = vsub.f32 %v512, %v513
        %v515 = vlaneseq
        %v516 = vshrl.u32 %v515, 7
        %v517 = vsub.s32 6, %v516
        %v518 = vrot.slane %v255, %v517
        %v519 = vsub.f32 %v255, %v518
        %v520 = vlaneseq
        %v521 = vshrl.u32 %v520, 7
        %v522 = vsub.s32 6, %v521
        %v523 = vrot.slane %v256, %v522
        %v524 = vsub.f32 %v256, %v523
        %v525 = vlaneseq
        %v526 = vshrl.u32 %v525, 7
        %v527 = vsub.s32 6, %v526
        %v528 = vrot.slane %v257, %v527
        %v529 = vsub.f32 %v257, %v528
        %v530 = vlaneseq
        %v531 = vshrl.u32 %v530, 7
        %v532 = vsub.s32 6, %v531
        %v533 = vrot.slane %v258, %v532
        %v534 = vsub.f32 %v258, %v533
        %v535 = vmul.f32 %v524, %v524
        %v536 = vmul.f32 %v529, %v529
        %v537 = vadd.f32 %v535, %v536
        %v538 = vmul.f32 %v534, %v534
        %v539 = vadd.f32 %v537, %v538
        %v540 = vmul.f32 %v519, %v519
        %v541 = vsub.f32 %v539, %v540
        %v542 = vlaneseq
        %v543 = vshrl.u32 %v542, 7
        %v544 = vsub.s32 7, %v543
        %v545 = vrot.slane %v255, %v544
        %v546 = vsub.f32 %v255, %v545
        %v547 = vlaneseq
        %v548 = vshrl.u32 %v547, 7
        %v549 = vsub.s32 7, %v548
        %v550 = vrot.slane %v256, %v549
        %v551 = vsub.f32 %v256, %v550
        %v552 = vlaneseq
        %v553 = vshrl.u32 %v552, 7
        %v554 = vsub.s32 7, %v553
        %v555 = vrot.slane %v257, %v554
        %v556 = vsub.f32 %v257, %v555
        %v557 = vlaneseq
        %v558 = vshrl.u32 %v557, 7
        %v559 = vsub.s32 7, %v558
        %v560 = vrot.slane %v258, %v559
        %v561 = vsub.f32 %v258, %v560
        %v562 = vmul.f32 %v551, %v551
        %v563 = vmul.f32 %v556, %v556
        %v564 = vadd.f32 %v562, %v563
        %v565 = vmul.f32 %v561, %v561
        %v566 = vadd.f32 %v564, %v565
        %v567 = vmul.f32 %v546, %v546
        %v568 = vsub.f32 %v566, %v567
        %s569 = sld [smem:[#allocation10]]
        %v570 = vstv %s569
        %v571 = vmul.f32 %v570, %v379
        %s572 = sld [smem:[#allocation10 + $0x1]]
        %v573 = vstv %s572
        %v574 = vmul.f32 %v573, %v406
        %v575 = vadd.f32 %v571, %v574
        %s576 = sld [smem:[#allocation10 + $0x2]]
        %v577 = vstv %s576
        %v578 = vmul.f32 %v577, %v433
        %v579 = vadd.f32 %v575, %v578
        %s580 = sld [smem:[#allocation10 + $0x3]]
        %v581 = vstv %s580
        %v582 = vmul.f32 %v581, %v460
        %v583 = vadd.f32 %v579, %v582
        %s584 = sld [smem:[#allocation10 + $0x4]]
        %v585 = vstv %s584
        %v586 = vmul.f32 %v585, %v487
        %v587 = vadd.f32 %v583, %v586
        %s588 = sld [smem:[#allocation10 + $0x5]]
        %v589 = vstv %s588
        %v590 = vmul.f32 %v589, %v514
        %v591 = vadd.f32 %v587, %v590
        %s592 = sld [smem:[#allocation10 + $0x6]]
        %v593 = vstv %s592
        %v594 = vmul.f32 %v593, %v541
        %v595 = vadd.f32 %v591, %v594
        %s596 = sld [smem:[#allocation10 + $0x7]]
        %v597 = vstv %s596
        %v598 = vmul.f32 %v597, %v568
        %v599 = vadd.f32 %v595, %v598
        %s600 = scalar_lea.vmem %s254, 24 [#allocation11]
        %601 = vst [vmem:[%s600] sm:$0xff] %v599
        %s602 = sld [smem:[#allocation10 + $0x8]]
        %v603 = vstv %s602
        %v604 = vmul.f32 %v603, %v379
        %s605 = sld [smem:[#allocation10 + $0x9]]
        %v606 = vstv %s605
        %v607 = vmul.f32 %v606, %v406
        %v608 = vadd.f32 %v604, %v607
        %s609 = sld [smem:[#allocation10 + $0xa]]
        %v610 = vstv %s609
        %v611 = vmul.f32 %v610, %v433
        %v612 = vadd.f32 %v608, %v611
        %s613 = sld [smem:[#allocation10 + $0xb]]
        %v614 = vstv %s613
        %v615 = vmul.f32 %v614, %v460
        %v616 = vadd.f32 %v612, %v615
        %s617 = sld [smem:[#allocation10 + $0xc]]
        %v618 = vstv %s617
        %v619 = vmul.f32 %v618, %v487
        %v620 = vadd.f32 %v616, %v619
        %s621 = sld [smem:[#allocation10 + $0xd]]
        %v622 = vstv %s621
        %v623 = vmul.f32 %v622, %v514
        %v624 = vadd.f32 %v620, %v623
        %s625 = sld [smem:[#allocation10 + $0xe]]
        %v626 = vstv %s625
        %v627 = vmul.f32 %v626, %v541
        %v628 = vadd.f32 %v624, %v627
        %s629 = sld [smem:[#allocation10 + $0xf]]
        %v630 = vstv %s629
        %v631 = vmul.f32 %v630, %v568
        %v632 = vadd.f32 %v628, %v631
        %s633 = scalar_lea.vmem %s254, 32 [#allocation11]
        %634 = vst [vmem:[%s633] sm:$0xff] %v632
        %s635 = sld [smem:[#allocation9 + $0xc0]]
        %v636 = vstv %s635
        %v637 = vmul.f32 %v636, %v379
        %s638 = sld [smem:[#allocation9 + $0xc8]]
        %v639 = vstv %s638
        %v640 = vmul.f32 %v639, %v406
        %v641 = vadd.f32 %v637, %v640
        %s642 = sld [smem:[#allocation9 + $0xd0]]
        %v643 = vstv %s642
        %v644 = vmul.f32 %v643, %v433
        %v645 = vadd.f32 %v641, %v644
        %s646 = sld [smem:[#allocation9 + $0xd8]]
        %v647 = vstv %s646
        %v648 = vmul.f32 %v647, %v460
        %v649 = vadd.f32 %v645, %v648
        %s650 = sld [smem:[#allocation9 + $0xe0]]
        %v651 = vstv %s650
        %v652 = vmul.f32 %v651, %v487
        %v653 = vadd.f32 %v649, %v652
        %s654 = sld [smem:[#allocation9 + $0xe8]]
        %v655 = vstv %s654
        %v656 = vmul.f32 %v655, %v514
        %v657 = vadd.f32 %v653, %v656
        %s658 = sld [smem:[#allocation9 + $0xf0]]
        %v659 = vstv %s658
        %v660 = vmul.f32 %v659, %v541
        %v661 = vadd.f32 %v657, %v660
        %s662 = sld [smem:[#allocation9 + $0xf8]]
        %v663 = vstv %s662
        %v664 = vmul.f32 %v663, %v568
        %v665 = vadd.f32 %v661, %v664
        %s666 = sld [smem:[#allocation9 + $0xc1]]
        %v667 = vstv %s666
        %v668 = vmul.f32 %v667, %v379
        %s669 = sld [smem:[#allocation9 + $0xc9]]
        %v670 = vstv %s669
        %v671 = vmul.f32 %v670, %v406
        %v672 = vadd.f32 %v668, %v671
        %s673 = sld [smem:[#allocation9 + $0xd1]]
        %v674 = vstv %s673
        %v675 = vmul.f32 %v674, %v433
        %v676 = vadd.f32 %v672, %v675
        %s677 = sld [smem:[#allocation9 + $0xd9]]
        %v678 = vstv %s677
        %v679 = vmul.f32 %v678, %v460
        %v680 = vadd.f32 %v676, %v679
        %s681 = sld [smem:[#allocation9 + $0xe1]]
        %v682 = vstv %s681
        %v683 = vmul.f32 %v682, %v487
        %v684 = vadd.f32 %v680, %v683
        %s685 = sld [smem:[#allocation9 + $0xe9]]
        %v686 = vstv %s685
        %v687 = vmul.f32 %v686, %v514
        %v688 = vadd.f32 %v684, %v687
        %s689 = sld [smem:[#allocation9 + $0xf1]]
        %v690 = vstv %s689
        %v691 = vmul.f32 %v690, %v541
        %v692 = vadd.f32 %v688, %v691
        %s693 = sld [smem:[#allocation9 + $0xf9]]
        %v694 = vstv %s693
        %v695 = vmul.f32 %v694, %v568
        %v696 = vadd.f32 %v692, %v695
        %v697 = vmin.f32 %v665, %v696
        %s698 = sld [smem:[#allocation9 + $0xc2]]
        %v699 = vstv %s698
        %v700 = vmul.f32 %v699, %v379
        %s701 = sld [smem:[#allocation9 + $0xca]]
        %v702 = vstv %s701
        %v703 = vmul.f32 %v702, %v406
        %v704 = vadd.f32 %v700, %v703
        %s705 = sld [smem:[#allocation9 + $0xd2]]
        %v706 = vstv %s705
        %v707 = vmul.f32 %v706, %v433
        %v708 = vadd.f32 %v704, %v707
        %s709 = sld [smem:[#allocation9 + $0xda]]
        %v710 = vstv %s709
        %v711 = vmul.f32 %v710, %v460
        %v712 = vadd.f32 %v708, %v711
        %s713 = sld [smem:[#allocation9 + $0xe2]]
        %v714 = vstv %s713
        %v715 = vmul.f32 %v714, %v487
        %v716 = vadd.f32 %v712, %v715
        %s717 = sld [smem:[#allocation9 + $0xea]]
        %v718 = vstv %s717
        %v719 = vmul.f32 %v718, %v514
        %v720 = vadd.f32 %v716, %v719
        %s721 = sld [smem:[#allocation9 + $0xf2]]
        %v722 = vstv %s721
        %v723 = vmul.f32 %v722, %v541
        %v724 = vadd.f32 %v720, %v723
        %s725 = sld [smem:[#allocation9 + $0xfa]]
        %v726 = vstv %s725
        %v727 = vmul.f32 %v726, %v568
        %v728 = vadd.f32 %v724, %v727
        %v729 = vmin.f32 %v697, %v728
        %s730 = sld [smem:[#allocation9 + $0xc3]]
        %v731 = vstv %s730
        %v732 = vmul.f32 %v731, %v379
        %s733 = sld [smem:[#allocation9 + $0xcb]]
        %v734 = vstv %s733
        %v735 = vmul.f32 %v734, %v406
        %v736 = vadd.f32 %v732, %v735
        %s737 = sld [smem:[#allocation9 + $0xd3]]
        %v738 = vstv %s737
        %v739 = vmul.f32 %v738, %v433
        %v740 = vadd.f32 %v736, %v739
        %s741 = sld [smem:[#allocation9 + $0xdb]]
        %v742 = vstv %s741
        %v743 = vmul.f32 %v742, %v460
        %v744 = vadd.f32 %v740, %v743
        %s745 = sld [smem:[#allocation9 + $0xe3]]
        %v746 = vstv %s745
        %v747 = vmul.f32 %v746, %v487
        %v748 = vadd.f32 %v744, %v747
        %s749 = sld [smem:[#allocation9 + $0xeb]]
        %v750 = vstv %s749
        %v751 = vmul.f32 %v750, %v514
        %v752 = vadd.f32 %v748, %v751
        %s753 = sld [smem:[#allocation9 + $0xf3]]
        %v754 = vstv %s753
        %v755 = vmul.f32 %v754, %v541
        %v756 = vadd.f32 %v752, %v755
        %s757 = sld [smem:[#allocation9 + $0xfb]]
        %v758 = vstv %s757
        %v759 = vmul.f32 %v758, %v568
        %v760 = vadd.f32 %v756, %v759
        %v761 = vmin.f32 %v729, %v760
        %s762 = sld [smem:[#allocation9 + $0xc4]]
        %v763 = vstv %s762
        %v764 = vmul.f32 %v763, %v379
        %s765 = sld [smem:[#allocation9 + $0xcc]]
        %v766 = vstv %s765
        %v767 = vmul.f32 %v766, %v406
        %v768 = vadd.f32 %v764, %v767
        %s769 = sld [smem:[#allocation9 + $0xd4]]
        %v770 = vstv %s769
        %v771 = vmul.f32 %v770, %v433
        %v772 = vadd.f32 %v768, %v771
        %s773 = sld [smem:[#allocation9 + $0xdc]]
        %v774 = vstv %s773
        %v775 = vmul.f32 %v774, %v460
        %v776 = vadd.f32 %v772, %v775
        %s777 = sld [smem:[#allocation9 + $0xe4]]
        %v778 = vstv %s777
        %v779 = vmul.f32 %v778, %v487
        %v780 = vadd.f32 %v776, %v779
        %s781 = sld [smem:[#allocation9 + $0xec]]
        %v782 = vstv %s781
        %v783 = vmul.f32 %v782, %v514
        %v784 = vadd.f32 %v780, %v783
        %s785 = sld [smem:[#allocation9 + $0xf4]]
        %v786 = vstv %s785
        %v787 = vmul.f32 %v786, %v541
        %v788 = vadd.f32 %v784, %v787
        %s789 = sld [smem:[#allocation9 + $0xfc]]
        %v790 = vstv %s789
        %v791 = vmul.f32 %v790, %v568
        %v792 = vadd.f32 %v788, %v791
        %v793 = vmin.f32 %v761, %v792
        %s794 = sld [smem:[#allocation9 + $0xc5]]
        %v795 = vstv %s794
        %v796 = vmul.f32 %v795, %v379
        %s797 = sld [smem:[#allocation9 + $0xcd]]
        %v798 = vstv %s797
        %v799 = vmul.f32 %v798, %v406
        %v800 = vadd.f32 %v796, %v799
        %s801 = sld [smem:[#allocation9 + $0xd5]]
        %v802 = vstv %s801
        %v803 = vmul.f32 %v802, %v433
        %v804 = vadd.f32 %v800, %v803
        %s805 = sld [smem:[#allocation9 + $0xdd]]
        %v806 = vstv %s805
        %v807 = vmul.f32 %v806, %v460
        %v808 = vadd.f32 %v804, %v807
        %s809 = sld [smem:[#allocation9 + $0xe5]]
        %v810 = vstv %s809
        %v811 = vmul.f32 %v810, %v487
        %v812 = vadd.f32 %v808, %v811
        %s813 = sld [smem:[#allocation9 + $0xed]]
        %v814 = vstv %s813
        %v815 = vmul.f32 %v814, %v514
        %v816 = vadd.f32 %v812, %v815
        %s817 = sld [smem:[#allocation9 + $0xf5]]
        %v818 = vstv %s817
        %v819 = vmul.f32 %v818, %v541
        %v820 = vadd.f32 %v816, %v819
        %s821 = sld [smem:[#allocation9 + $0xfd]]
        %v822 = vstv %s821
        %v823 = vmul.f32 %v822, %v568
        %v824 = vadd.f32 %v820, %v823
        %v825 = vmin.f32 %v793, %v824
        %s826 = sld [smem:[#allocation9 + $0xc6]]
        %v827 = vstv %s826
        %v828 = vmul.f32 %v827, %v379
        %s829 = sld [smem:[#allocation9 + $0xce]]
        %v830 = vstv %s829
        %v831 = vmul.f32 %v830, %v406
        %v832 = vadd.f32 %v828, %v831
        %s833 = sld [smem:[#allocation9 + $0xd6]]
        %v834 = vstv %s833
        %v835 = vmul.f32 %v834, %v433
        %v836 = vadd.f32 %v832, %v835
        %s837 = sld [smem:[#allocation9 + $0xde]]
        %v838 = vstv %s837
        %v839 = vmul.f32 %v838, %v460
        %v840 = vadd.f32 %v836, %v839
        %s841 = sld [smem:[#allocation9 + $0xe6]]
        %v842 = vstv %s841
        %v843 = vmul.f32 %v842, %v487
        %v844 = vadd.f32 %v840, %v843
        %s845 = sld [smem:[#allocation9 + $0xee]]
        %v846 = vstv %s845
        %v847 = vmul.f32 %v846, %v514
        %v848 = vadd.f32 %v844, %v847
        %s849 = sld [smem:[#allocation9 + $0xf6]]
        %v850 = vstv %s849
        %v851 = vmul.f32 %v850, %v541
        %v852 = vadd.f32 %v848, %v851
        %s853 = sld [smem:[#allocation9 + $0xfe]]
        %v854 = vstv %s853
        %v855 = vmul.f32 %v854, %v568
        %v856 = vadd.f32 %v852, %v855
        %v857 = vmin.f32 %v825, %v856
        %s858 = sld [smem:[#allocation9 + $0xc7]]
        %v859 = vstv %s858
        %v860 = vmul.f32 %v859, %v379
        %s861 = sld [smem:[#allocation9 + $0xcf]]
        %v862 = vstv %s861
        %v863 = vmul.f32 %v862, %v406
        %v864 = vadd.f32 %v860, %v863
        %s865 = sld [smem:[#allocation9 + $0xd7]]
        %v866 = vstv %s865
        %v867 = vmul.f32 %v866, %v433
        %v868 = vadd.f32 %v864, %v867
        %s869 = sld [smem:[#allocation9 + $0xdf]]
        %v870 = vstv %s869
        %v871 = vmul.f32 %v870, %v460
        %v872 = vadd.f32 %v868, %v871
        %s873 = sld [smem:[#allocation9 + $0xe7]]
        %v874 = vstv %s873
        %v875 = vmul.f32 %v874, %v487
        %v876 = vadd.f32 %v872, %v875
        %s877 = sld [smem:[#allocation9 + $0xef]]
        %v878 = vstv %s877
        %v879 = vmul.f32 %v878, %v514
        %v880 = vadd.f32 %v876, %v879
        %s881 = sld [smem:[#allocation9 + $0xf7]]
        %v882 = vstv %s881
        %v883 = vmul.f32 %v882, %v541
        %v884 = vadd.f32 %v880, %v883
        %s885 = sld [smem:[#allocation9 + $0xff]]
        %v886 = vstv %s885
        %v887 = vmul.f32 %v886, %v568
        %v888 = vadd.f32 %v884, %v887
        %v889 = vmin.f32 %v857, %v888
        %s890 = scalar_lea.vmem %s254, 40 [#allocation11]
        %891 = vst [vmem:[%s890] sm:$0xff] %v889
        %s892 = sld [smem:[#allocation9 + $0x100]]
        %v893 = vstv %s892
        %v894 = vmul.f32 %v893, %v379
        %s895 = sld [smem:[#allocation9 + $0x108]]
        %v896 = vstv %s895
        %v897 = vmul.f32 %v896, %v406
        %v898 = vadd.f32 %v894, %v897
        %s899 = sld [smem:[#allocation9 + $0x110]]
        %v900 = vstv %s899
        %v901 = vmul.f32 %v900, %v433
        %v902 = vadd.f32 %v898, %v901
        %s903 = sld [smem:[#allocation9 + $0x118]]
        %v904 = vstv %s903
        %v905 = vmul.f32 %v904, %v460
        %v906 = vadd.f32 %v902, %v905
        %s907 = sld [smem:[#allocation9 + $0x120]]
        %v908 = vstv %s907
        %v909 = vmul.f32 %v908, %v487
        %v910 = vadd.f32 %v906, %v909
        %s911 = sld [smem:[#allocation9 + $0x128]]
        %v912 = vstv %s911
        %v913 = vmul.f32 %v912, %v514
        %v914 = vadd.f32 %v910, %v913
        %s915 = sld [smem:[#allocation9 + $0x130]]
        %v916 = vstv %s915
        %v917 = vmul.f32 %v916, %v541
        %v918 = vadd.f32 %v914, %v917
        %s919 = sld [smem:[#allocation9 + $0x138]]
        %v920 = vstv %s919
        %v921 = vmul.f32 %v920, %v568
        %v922 = vadd.f32 %v918, %v921
        %s923 = sld [smem:[#allocation9 + $0x101]]
        %v924 = vstv %s923
        %v925 = vmul.f32 %v924, %v379
        %s926 = sld [smem:[#allocation9 + $0x109]]
        %v927 = vstv %s926
        %v928 = vmul.f32 %v927, %v406
        %v929 = vadd.f32 %v925, %v928
        %s930 = sld [smem:[#allocation9 + $0x111]]
        %v931 = vstv %s930
        %v932 = vmul.f32 %v931, %v433
        %v933 = vadd.f32 %v929, %v932
        %s934 = sld [smem:[#allocation9 + $0x119]]
        %v935 = vstv %s934
        %v936 = vmul.f32 %v935, %v460
        %v937 = vadd.f32 %v933, %v936
        %s938 = sld [smem:[#allocation9 + $0x121]]
        %v939 = vstv %s938
        %v940 = vmul.f32 %v939, %v487
        %v941 = vadd.f32 %v937, %v940
        %s942 = sld [smem:[#allocation9 + $0x129]]
        %v943 = vstv %s942
        %v944 = vmul.f32 %v943, %v514
        %v945 = vadd.f32 %v941, %v944
        %s946 = sld [smem:[#allocation9 + $0x131]]
        %v947 = vstv %s946
        %v948 = vmul.f32 %v947, %v541
        %v949 = vadd.f32 %v945, %v948
        %s950 = sld [smem:[#allocation9 + $0x139]]
        %v951 = vstv %s950
        %v952 = vmul.f32 %v951, %v568
        %v953 = vadd.f32 %v949, %v952
        %v954 = vmin.f32 %v922, %v953
        %s955 = sld [smem:[#allocation9 + $0x102]]
        %v956 = vstv %s955
        %v957 = vmul.f32 %v956, %v379
        %s958 = sld [smem:[#allocation9 + $0x10a]]
        %v959 = vstv %s958
        %v960 = vmul.f32 %v959, %v406
        %v961 = vadd.f32 %v957, %v960
        %s962 = sld [smem:[#allocation9 + $0x112]]
        %v963 = vstv %s962
        %v964 = vmul.f32 %v963, %v433
        %v965 = vadd.f32 %v961, %v964
        %s966 = sld [smem:[#allocation9 + $0x11a]]
        %v967 = vstv %s966
        %v968 = vmul.f32 %v967, %v460
        %v969 = vadd.f32 %v965, %v968
        %s970 = sld [smem:[#allocation9 + $0x122]]
        %v971 = vstv %s970
        %v972 = vmul.f32 %v971, %v487
        %v973 = vadd.f32 %v969, %v972
        %s974 = sld [smem:[#allocation9 + $0x12a]]
        %v975 = vstv %s974
        %v976 = vmul.f32 %v975, %v514
        %v977 = vadd.f32 %v973, %v976
        %s978 = sld [smem:[#allocation9 + $0x132]]
        %v979 = vstv %s978
        %v980 = vmul.f32 %v979, %v541
        %v981 = vadd.f32 %v977, %v980
        %s982 = sld [smem:[#allocation9 + $0x13a]]
        %v983 = vstv %s982
        %v984 = vmul.f32 %v983, %v568
        %v985 = vadd.f32 %v981, %v984
        %v986 = vmin.f32 %v954, %v985
        %s987 = sld [smem:[#allocation9 + $0x103]]
        %v988 = vstv %s987
        %v989 = vmul.f32 %v988, %v379
        %s990 = sld [smem:[#allocation9 + $0x10b]]
        %v991 = vstv %s990
        %v992 = vmul.f32 %v991, %v406
        %v993 = vadd.f32 %v989, %v992
        %s994 = sld [smem:[#allocation9 + $0x113]]
        %v995 = vstv %s994
        %v996 = vmul.f32 %v995, %v433
        %v997 = vadd.f32 %v993, %v996
        %s998 = sld [smem:[#allocation9 + $0x11b]]
        %v999 = vstv %s998
        %v1000 = vmul.f32 %v999, %v460
        %v1001 = vadd.f32 %v997, %v1000
        %s1002 = sld [smem:[#allocation9 + $0x123]]
        %v1003 = vstv %s1002
        %v1004 = vmul.f32 %v1003, %v487
        %v1005 = vadd.f32 %v1001, %v1004
        %s1006 = sld [smem:[#allocation9 + $0x12b]]
        %v1007 = vstv %s1006
        %v1008 = vmul.f32 %v1007, %v514
        %v1009 = vadd.f32 %v1005, %v1008
        %s1010 = sld [smem:[#allocation9 + $0x133]]
        %v1011 = vstv %s1010
        %v1012 = vmul.f32 %v1011, %v541
        %v1013 = vadd.f32 %v1009, %v1012
        %s1014 = sld [smem:[#allocation9 + $0x13b]]
        %v1015 = vstv %s1014
        %v1016 = vmul.f32 %v1015, %v568
        %v1017 = vadd.f32 %v1013, %v1016
        %v1018 = vmin.f32 %v986, %v1017
        %s1019 = sld [smem:[#allocation9 + $0x104]]
        %v1020 = vstv %s1019
        %v1021 = vmul.f32 %v1020, %v379
        %s1022 = sld [smem:[#allocation9 + $0x10c]]
        %v1023 = vstv %s1022
        %v1024 = vmul.f32 %v1023, %v406
        %v1025 = vadd.f32 %v1021, %v1024
        %s1026 = sld [smem:[#allocation9 + $0x114]]
        %v1027 = vstv %s1026
        %v1028 = vmul.f32 %v1027, %v433
        %v1029 = vadd.f32 %v1025, %v1028
        %s1030 = sld [smem:[#allocation9 + $0x11c]]
        %v1031 = vstv %s1030
        %v1032 = vmul.f32 %v1031, %v460
        %v1033 = vadd.f32 %v1029, %v1032
        %s1034 = sld [smem:[#allocation9 + $0x124]]
        %v1035 = vstv %s1034
        %v1036 = vmul.f32 %v1035, %v487
        %v1037 = vadd.f32 %v1033, %v1036
        %s1038 = sld [smem:[#allocation9 + $0x12c]]
        %v1039 = vstv %s1038
        %v1040 = vmul.f32 %v1039, %v514
        %v1041 = vadd.f32 %v1037, %v1040
        %s1042 = sld [smem:[#allocation9 + $0x134]]
        %v1043 = vstv %s1042
        %v1044 = vmul.f32 %v1043, %v541
        %v1045 = vadd.f32 %v1041, %v1044
        %s1046 = sld [smem:[#allocation9 + $0x13c]]
        %v1047 = vstv %s1046
        %v1048 = vmul.f32 %v1047, %v568
        %v1049 = vadd.f32 %v1045, %v1048
        %v1050 = vmin.f32 %v1018, %v1049
        %s1051 = sld [smem:[#allocation9 + $0x105]]
        %v1052 = vstv %s1051
        %v1053 = vmul.f32 %v1052, %v379
        %s1054 = sld [smem:[#allocation9 + $0x10d]]
        %v1055 = vstv %s1054
        %v1056 = vmul.f32 %v1055, %v406
        %v1057 = vadd.f32 %v1053, %v1056
        %s1058 = sld [smem:[#allocation9 + $0x115]]
        %v1059 = vstv %s1058
        %v1060 = vmul.f32 %v1059, %v433
        %v1061 = vadd.f32 %v1057, %v1060
        %s1062 = sld [smem:[#allocation9 + $0x11d]]
        %v1063 = vstv %s1062
        %v1064 = vmul.f32 %v1063, %v460
        %v1065 = vadd.f32 %v1061, %v1064
        %s1066 = sld [smem:[#allocation9 + $0x125]]
        %v1067 = vstv %s1066
        %v1068 = vmul.f32 %v1067, %v487
        %v1069 = vadd.f32 %v1065, %v1068
        %s1070 = sld [smem:[#allocation9 + $0x12d]]
        %v1071 = vstv %s1070
        %v1072 = vmul.f32 %v1071, %v514
        %v1073 = vadd.f32 %v1069, %v1072
        %s1074 = sld [smem:[#allocation9 + $0x135]]
        %v1075 = vstv %s1074
        %v1076 = vmul.f32 %v1075, %v541
        %v1077 = vadd.f32 %v1073, %v1076
        %s1078 = sld [smem:[#allocation9 + $0x13d]]
        %v1079 = vstv %s1078
        %v1080 = vmul.f32 %v1079, %v568
        %v1081 = vadd.f32 %v1077, %v1080
        %v1082 = vmin.f32 %v1050, %v1081
        %s1083 = sld [smem:[#allocation9 + $0x106]]
        %v1084 = vstv %s1083
        %v1085 = vmul.f32 %v1084, %v379
        %s1086 = sld [smem:[#allocation9 + $0x10e]]
        %v1087 = vstv %s1086
        %v1088 = vmul.f32 %v1087, %v406
        %v1089 = vadd.f32 %v1085, %v1088
        %s1090 = sld [smem:[#allocation9 + $0x116]]
        %v1091 = vstv %s1090
        %v1092 = vmul.f32 %v1091, %v433
        %v1093 = vadd.f32 %v1089, %v1092
        %s1094 = sld [smem:[#allocation9 + $0x11e]]
        %v1095 = vstv %s1094
        %v1096 = vmul.f32 %v1095, %v460
        %v1097 = vadd.f32 %v1093, %v1096
        %s1098 = sld [smem:[#allocation9 + $0x126]]
        %v1099 = vstv %s1098
        %v1100 = vmul.f32 %v1099, %v487
        %v1101 = vadd.f32 %v1097, %v1100
        %s1102 = sld [smem:[#allocation9 + $0x12e]]
        %v1103 = vstv %s1102
        %v1104 = vmul.f32 %v1103, %v514
        %v1105 = vadd.f32 %v1101, %v1104
        %s1106 = sld [smem:[#allocation9 + $0x136]]
        %v1107 = vstv %s1106
        %v1108 = vmul.f32 %v1107, %v541
        %v1109 = vadd.f32 %v1105, %v1108
        %s1110 = sld [smem:[#allocation9 + $0x13e]]
        %v1111 = vstv %s1110
        %v1112 = vmul.f32 %v1111, %v568
        %v1113 = vadd.f32 %v1109, %v1112
        %v1114 = vmin.f32 %v1082, %v1113
        %s1115 = sld [smem:[#allocation9 + $0x107]]
        %v1116 = vstv %s1115
        %v1117 = vmul.f32 %v1116, %v379
        %s1118 = sld [smem:[#allocation9 + $0x10f]]
        %v1119 = vstv %s1118
        %v1120 = vmul.f32 %v1119, %v406
        %v1121 = vadd.f32 %v1117, %v1120
        %s1122 = sld [smem:[#allocation9 + $0x117]]
        %v1123 = vstv %s1122
        %v1124 = vmul.f32 %v1123, %v433
        %v1125 = vadd.f32 %v1121, %v1124
        %s1126 = sld [smem:[#allocation9 + $0x11f]]
        %v1127 = vstv %s1126
        %v1128 = vmul.f32 %v1127, %v460
        %v1129 = vadd.f32 %v1125, %v1128
        %s1130 = sld [smem:[#allocation9 + $0x127]]
        %v1131 = vstv %s1130
        %v1132 = vmul.f32 %v1131, %v487
        %v1133 = vadd.f32 %v1129, %v1132
        %s1134 = sld [smem:[#allocation9 + $0x12f]]
        %v1135 = vstv %s1134
        %v1136 = vmul.f32 %v1135, %v514
        %v1137 = vadd.f32 %v1133, %v1136
        %s1138 = sld [smem:[#allocation9 + $0x137]]
        %v1139 = vstv %s1138
        %v1140 = vmul.f32 %v1139, %v541
        %v1141 = vadd.f32 %v1137, %v1140
        %s1142 = sld [smem:[#allocation9 + $0x13f]]
        %v1143 = vstv %s1142
        %v1144 = vmul.f32 %v1143, %v568
        %v1145 = vadd.f32 %v1141, %v1144
        %v1146 = vmin.f32 %v1114, %v1145
        %s1147 = scalar_lea.vmem %s254, 48 [#allocation11]
        %1148 = vst [vmem:[%s1147] sm:$0xff] %v1146
        %s1149 = sand.u32 %s121, 1
        %s1150 = scalar_lea.sflag [#allocation4], %s1149
        %s1151 = sand.u32 %s121, 1
        %s1152 = smul.addr %s1151, 56
        %s1153 = scalar_lea.vmem [#allocation11], %s1152
        // Predicated region
        $region53: #{tpu_custom_call.1} parent=35 // pred_check
          %p1154 = pneg %p131
        $region54: #{tpu_custom_call.1} parent=35 // pred_check_branch
          %1156 = sbr.rel (%p1154) target = $region56
        $region55: #{tpu_custom_call.1} parent=35 // pred_region
          %s1158 = ssub.s32 896, 896
          %1159 = vsyncadd %s1150, %s1158
          %s1160 = smul.addr %s24, 128
          %s1161 = scalar_lea.hbm %s4, %s1160
          %s1162 = sshll.u32 %s1153, 4
          %s1163 = int_to_ptr.vmem [resolvable:$true] %s1162
          %1168 = dma.vmem_to_hbm [thread:$0]  %s1163, 896, %s1161, %s1150, 128, 256, 8
        $region56: #{tpu_custom_call.1} parent=35 // pred_fallthru
          _
      $region36: #{tpu_custom_call.1} parent=5 // pred_fallthru
        _
      %p1169 = scmp.le.s32.totalorder 2, %s19
      // Predicated region
      $region57: #{tpu_custom_call.1} parent=5 // pred_check
        %p1170 = pneg %p1169
      $region58: #{tpu_custom_call.1} parent=5 // pred_check_branch
        %1172 = sbr.rel (%p1170) target = $region60
      $region59: #{tpu_custom_call.1} parent=5 // pred_region
        %s1173 = ssub.s32 %s19, 2
        // Predicated region
        $region61: #{tpu_custom_call.1} parent=59 // pred_check
          %p1174 = pneg %p137
        $region62: #{tpu_custom_call.1} parent=59 // pred_check_branch
          %1176 = sbr.rel (%p1174) target = $region64
        $region63: #{tpu_custom_call.1} parent=59 // pred_region
          %s1177 = sand.u32 %s122, 1
          %s1178 = scalar_lea.sflag [#allocation4], %s1177
          %s1179 = sand.u32 %s122, 1
          %s1180 = smul.addr %s1179, 56
          %s1181 = scalar_lea.vmem [#allocation11], %s1180
          %1182 = dma.done %s1178, 896
        $region64: #{tpu_custom_call.1} parent=59 // pred_fallthru
          _
      $region60: #{tpu_custom_call.1} parent=5 // pred_fallthru
        _
    $region6: #{tpu_custom_call.1} parent=1 // loop_footer
      %s23 = sadd.s32 1, %s19
    $region7: #{tpu_custom_call.1} parent=1 // loop_footer_branch
      %18 = sbr.rel target = $region3
    $region8: #{tpu_custom_call.1} parent=1 // loop_exit
      _
    %1183 = vsyncpa [#allocation3], 1
    %s1184 = scalar_lea.sflag [#allocation3], 1
    %1185 = vsyncpa %s1184, 1
    %1186 = vsyncpa [#allocation8], 1
    %1187 = vsyncpa [#allocation4], 1
    %s1188 = scalar_lea.sflag [#allocation4], 1
    %1189 = vsyncpa %s1188, 1
    %1190 = vsyncpa [#allocation5], 1
    %s1191 = scalar_lea.sflag [#allocation5], 1
    %1192 = vsyncpa %s1191, 1
    %1193 = vsyncpa [#allocation6], 1
    %s1194 = scalar_lea.sflag [#allocation6], 1
    %1195 = vsyncpa %s1194, 1

</llo_original>
